<compile_context>
chip_gen: v6e
topology: v6e:2x2x1
jax: 0.10.0
libtpu: 0.0.40
codegen_flags: <defaults>
</compile_context>

<pallas_src>
import jax
import jax.numpy as jnp
from jax.experimental import pallas as pl
from jax.experimental.pallas import tpu as pltpu


def _round_up(n, m):
    return ((n + m - 1) // m) * m


def prepare_lstm_params(w_ih, w_hh, b_ih, b_hh, w_lin, b_lin,
                        compute_dtype=jnp.bfloat16):
    """One-time parameter prep: transpose, pad to TPU-friendly shapes, cast.

    PyTorch shapes: w_ih (4H, I), w_hh (4H, H), b_* (4H,), w_lin (O, H),
    b_lin (O,).  Gate order [i, f, g, o].  Each gate is padded to Hp (a
    multiple of 128 lanes) so in-kernel gate slices are pure vreg views.
    """
    fourH, I = w_ih.shape
    H = fourH // 4
    O = w_lin.shape[0]
    Hp = _round_up(H, 128)
    Op = _round_up(O, 128)

    wih_t = jnp.zeros((I, 4 * Hp), jnp.float32)
    whh_t = jnp.zeros((Hp, 4 * Hp), jnp.float32)
    bias = jnp.zeros((1, 4 * Hp), jnp.float32)
    b_sum = (b_ih + b_hh).astype(jnp.float32)
    for k in range(4):
        wih_t = wih_t.at[:, k * Hp:k * Hp + H].set(
            w_ih[k * H:(k + 1) * H, :].T.astype(jnp.float32))
        whh_t = whh_t.at[:H, k * Hp:k * Hp + H].set(
            w_hh[k * H:(k + 1) * H, :].T.astype(jnp.float32))
        bias = bias.at[:, k * Hp:k * Hp + H].set(
            b_sum[k * H:(k + 1) * H][None, :])

    wlin_t = jnp.zeros((Hp, Op), jnp.float32).at[:H, :O].set(
        w_lin.T.astype(jnp.float32))
    blin = jnp.zeros((1, Op), jnp.float32).at[:, :O].set(
        b_lin.astype(jnp.float32)[None, :])

    return dict(
        wih=wih_t.astype(compute_dtype),     # (I, 4Hp)    bf16 (MXU)
        whh=whh_t.astype(compute_dtype),     # (Hp, 4Hp)   bf16 (MXU)
        wlin=wlin_t.astype(compute_dtype),   # (Hp, Op)    bf16 (MXU)
        bias=bias,                           # (1, 4Hp)    f32
        blin=blin,                           # (1, Op)     f32
        I=I, H=H, O=O, Hp=Hp, Op=Op,
        compute_dtype=compute_dtype,
    )


def lstm_model_forward(x_btI, params, *, time_chunk=None):
    """x_btI: (B, T, I) batch-first, like the PyTorch module. Returns (B, O) f32."""
    B, T, I = x_btI.shape
    assert I == params["I"]
    Hp, Op, O = params["Hp"], params["Op"], params["O"]
    cdt = params["compute_dtype"]

    sub = 16 if jnp.dtype(cdt) == jnp.dtype(jnp.bfloat16) else 8
    Bp = _round_up(max(B, sub), sub)
    # One batch tile per TensorCore when the padded batch allows it (v7x).
    BT = Bp // 2 if (Bp >= 2 * sub and Bp % (2 * sub) == 0) else Bp
    NB = Bp // BT

    TT = time_chunk if time_chunk is not None else (T if T <= 128 else 64)
    Tp = _round_up(T, TT)
    NT = Tp // TT
    needs_time_mask = (Tp != T)

    # Time-major, zero-padded, cast once (padded batch rows / timesteps are
    # never read back: extra timesteps are masked, extra rows sliced away).
    x_tb = jnp.transpose(x_btI, (1, 0, 2)).astype(cdt)        # (T, B, I)
    x_pad = jnp.zeros((Tp, Bp, I), cdt).at[:T, :B, :].set(x_tb)

    def kernel(x_ref, wih_ref, whh_ref, b_ref, wlin_ref, blin_ref,
               out_ref, h_scr, c_scr, gx_scr):
        t_idx = pl.program_id(1)

        @pl.when(t_idx == 0)
        def _():
            h_scr[...] = jnp.zeros_like(h_scr)
            c_scr[...] = jnp.zeros_like(c_scr)

        # ---- phase 1: input projection for the whole chunk (one MXU matmul).
        x_chunk = x_ref[...].reshape(TT * BT, I)
        gx = jnp.dot(x_chunk, wih_ref[...],
                     preferred_element_type=jnp.float32) + b_ref[...]
        gx_scr[...] = gx.reshape(TT, BT, 4 * Hp)

        # ---- phase 2: serial recurrence; one matmul + elementwise per step.
        whh = whh_ref[...]

        def sigmoid(v):  # tanh identity: 1 EUP push instead of exp + recip
            return 0.5 * jnp.tanh(0.5 * v) + 0.5

        def step(i, carry):
            h, c = carry
            g = gx_scr[i] + jnp.dot(h.astype(cdt), whh,
                                    preferred_element_type=jnp.float32)
            i_g = sigmoid(g[:, 0 * Hp:1 * Hp])      # lane-aligned gate slices
            f_g = sigmoid(g[:, 1 * Hp:2 * Hp])
            g_g = jnp.tanh(g[:, 2 * Hp:3 * Hp])
            o_g = sigmoid(g[:, 3 * Hp:4 * Hp])
            c_new = f_g * c + i_g * g_g
            h_new = o_g * jnp.tanh(c_new)
            if needs_time_mask:
                valid = (t_idx * TT + i) < T
                c_new = jnp.where(valid, c_new, c)
                h_new = jnp.where(valid, h_new, h)
            return h_new, c_new

        h, c = jax.lax.fori_loop(0, TT, step, (h_scr[...], c_scr[...]),
                                 unroll=True)
        h_scr[...] = h
        c_scr[...] = c

        @pl.when(t_idx == NT - 1)
        def _():
            out_ref[...] = (jnp.dot(h.astype(cdt), wlin_ref[...],
                                    preferred_element_type=jnp.float32)
                            + blin_ref[...]).astype(out_ref.dtype)

    grid_spec = pltpu.PrefetchScalarGridSpec(
        num_scalar_prefetch=0,
        grid=(NB, NT),
        in_specs=[
            pl.BlockSpec((TT, BT, I), lambda b, t: (t, b, 0)),   # x time-chunk
            pl.BlockSpec((I, 4 * Hp), lambda b, t: (0, 0)),      # W_ih^T (resident)
            pl.BlockSpec((Hp, 4 * Hp), lambda b, t: (0, 0)),     # W_hh^T (resident)
            pl.BlockSpec((1, 4 * Hp), lambda b, t: (0, 0)),      # bias
            pl.BlockSpec((Hp, Op), lambda b, t: (0, 0)),         # W_lin^T
            pl.BlockSpec((1, Op), lambda b, t: (0, 0)),          # b_lin
        ],
        out_specs=pl.BlockSpec((BT, Op), lambda b, t: (b, 0)),
        scratch_shapes=[
            pltpu.VMEM((BT, Hp), jnp.float32),          # h state (f32)
            pltpu.VMEM((BT, Hp), jnp.float32),          # c state (f32)
            pltpu.VMEM((TT, BT, 4 * Hp), jnp.float32),  # per-chunk x projection
        ],
    )

    out = pl.pallas_call(
        kernel,
        out_shape=jax.ShapeDtypeStruct((Bp, Op), jnp.float32),
        grid_spec=grid_spec,
        compiler_params=pltpu.CompilerParams(
            dimension_semantics=("parallel", "arbitrary")),  # time is sequential
    )(x_pad, params["wih"], params["whh"], params["bias"],
      params["wlin"], params["blin"])

    return out[:B, :O]


def _reference_forward(x_btI, w_ih, w_hh, b_ih, b_hh, w_lin, b_lin):
    """Pure-JAX f32 reference matching torch.nn.LSTM + Linear semantics."""
    B, T, I = x_btI.shape
    H = w_hh.shape[1]
    h = jnp.zeros((B, H), jnp.float32)
    c = jnp.zeros((B, H), jnp.float32)

    def step(carry, x_t):
        h, c = carry
        gates = x_t @ w_ih.T + b_ih + h @ w_hh.T + b_hh
        i = jax.nn.sigmoid(gates[:, 0:H])
        f = jax.nn.sigmoid(gates[:, H:2 * H])
        g = jnp.tanh(gates[:, 2 * H:3 * H])
        o = jax.nn.sigmoid(gates[:, 3 * H:4 * H])
        c = f * c + i * g
        h = o * jnp.tanh(c)
        return (h, c), None

    (h, c), _ = jax.lax.scan(step, (h, c), jnp.transpose(x_btI, (1, 0, 2)))
    return h @ w_lin.T + b_lin


if __name__ == "__main__":
    # Small shapes consistent with LSTMModel(input_size, hidden_size, output_size)
    B, T, I, H, O = 2, 8, 4, 32, 1

    key = jax.random.PRNGKey(0)
    ks = jax.random.split(key, 7)
    # Deterministic synthetic parameters (PyTorch shapes).
    w_ih = jax.random.normal(ks[0], (4 * H, I), jnp.float32) * 0.1
    w_hh = jax.random.normal(ks[1], (4 * H, H), jnp.float32) * 0.1
    b_ih = jax.random.normal(ks[2], (4 * H,), jnp.float32) * 0.1
    b_hh = jax.random.normal(ks[3], (4 * H,), jnp.float32) * 0.1
    w_lin = jax.random.normal(ks[4], (O, H), jnp.float32) * 0.1
    b_lin = jax.random.normal(ks[5], (O,), jnp.float32) * 0.1
    x = jax.random.normal(ks[6], (B, T, I), jnp.float32)

    params = prepare_lstm_params(w_ih, w_hh, b_ih, b_hh, w_lin, b_lin)  # one-time
    out = lstm_model_forward(x, params)
    out = jax.block_until_ready(out)

    ref = _reference_forward(x, w_ih, w_hh, b_ih, b_hh, w_lin, b_lin)
    assert out.shape == (B, O), out.shape
    # bf16 MXU inputs -> compare against the f32 reference with loose tolerance.
    assert jnp.allclose(out, ref, atol=3e-2, rtol=3e-2), (out, ref)

    print("KERNEL_OK")
</pallas_src>

<mosaic_0001>
module attributes {stable_mosaic.version = 11 : i64} {
  func.func @kernel(%arg0: i32, %arg1: i32, %arg2: memref<8x16x4xbf16, #tpu.memory_space<vmem>>, %arg3: memref<4x512xbf16, #tpu.memory_space<vmem>>, %arg4: memref<128x512xbf16, #tpu.memory_space<vmem>>, %arg5: memref<1x512xf32, #tpu.memory_space<vmem>>, %arg6: memref<128x128xbf16, #tpu.memory_space<vmem>>, %arg7: memref<1x128xf32, #tpu.memory_space<vmem>>, %arg8: memref<16x128xf32, #tpu.memory_space<vmem>>, %arg9: memref<16x128xf32, #tpu.memory_space<vmem>>, %arg10: memref<16x128xf32, #tpu.memory_space<vmem>>, %arg11: memref<8x16x512xf32, #tpu.memory_space<vmem>>) attributes {dimension_semantics = [#tpu.dimension_semantics<parallel>, #tpu.dimension_semantics<arbitrary>], iteration_bounds = array<i64: 1, 1>, scalar_prefetch = 0 : i64, scratch_operands = 3 : i64, tpu.core_type = #tpu.core_type<tc>, window_params = [{transform_indices = @transform_0, window_bounds = array<i64: 8, 16, 4>}, {pipeline_mode = #tpu.pipeline_mode<synchronous>, transform_indices = @transform_1, window_bounds = array<i64: 4, 512>}, {pipeline_mode = #tpu.pipeline_mode<synchronous>, transform_indices = @transform_2, window_bounds = array<i64: 128, 512>}, {pipeline_mode = #tpu.pipeline_mode<synchronous>, transform_indices = @transform_3, window_bounds = array<i64: 1, 512>}, {pipeline_mode = #tpu.pipeline_mode<synchronous>, transform_indices = @transform_4, window_bounds = array<i64: 128, 128>}, {pipeline_mode = #tpu.pipeline_mode<synchronous>, transform_indices = @transform_5, window_bounds = array<i64: 1, 128>}, {transform_indices = @transform_6, window_bounds = array<i64: 16, 128>}]} {
    %c0_i32 = arith.constant 0 : i32
    %0 = arith.cmpi eq, %arg1, %c0_i32 : i32
    %1 = arith.extui %0 : i1 to i32
    %c0_i32_0 = arith.constant 0 : i32
    %2 = arith.cmpi ne, %1, %c0_i32_0 : i32
    scf.if %2 {
      %cst_119 = arith.constant 0.000000e+00 : f32
      %316 = vector.broadcast %cst_119 : f32 to vector<16x128xf32>
      %c0_120 = arith.constant 0 : index
      %c0_121 = arith.constant 0 : index
      %317 = vector.load %arg9[%c0_120, %c0_121] : memref<16x128xf32, #tpu.memory_space<vmem>>, vector<16x128xf32>
      tpu.vector_store %arg9[%c0_120, %c0_121], %316 {strides = array<i32>} : memref<16x128xf32, #tpu.memory_space<vmem>>, vector<16x128xf32>,
      %cst_122 = arith.constant 0.000000e+00 : f32
      %318 = vector.broadcast %cst_122 : f32 to vector<16x128xf32>
      %c0_123 = arith.constant 0 : index
      %c0_124 = arith.constant 0 : index
      %319 = vector.load %arg10[%c0_123, %c0_124] : memref<16x128xf32, #tpu.memory_space<vmem>>, vector<16x128xf32>
      tpu.vector_store %arg10[%c0_123, %c0_124], %318 {strides = array<i32>} : memref<16x128xf32, #tpu.memory_space<vmem>>, vector<16x128xf32>,
    } else {
    }
    %c0 = arith.constant 0 : index
    %c0_1 = arith.constant 0 : index
    %c0_2 = arith.constant 0 : index
    %3 = vector.load %arg2[%c0, %c0_1, %c0_2] : memref<8x16x4xbf16, #tpu.memory_space<vmem>>, vector<8x16x4xbf16>
    %4 = vector.shape_cast %3 : vector<8x16x4xbf16> to vector<128x4xbf16>
    %c0_3 = arith.constant 0 : index
    %c0_4 = arith.constant 0 : index
    %5 = vector.load %arg3[%c0_3, %c0_4] : memref<4x512xbf16, #tpu.memory_space<vmem>>, vector<4x512xbf16>
    %cst = arith.constant dense<0.000000e+00> : vector<128x512xf32>
    %6 = tpu.matmul %4, %5, %cst {dimension_numbers = #tpu.dot_dimension_numbers<[1], [0], [0], [1], [0, 0, 1, 1], [], []>} : vector<128x4xbf16>, vector<4x512xbf16>, vector<128x512xf32> -> vector<128x512xf32>
    %c0_5 = arith.constant 0 : index
    %c0_6 = arith.constant 0 : index
    %7 = vector.load %arg5[%c0_5, %c0_6] : memref<1x512xf32, #tpu.memory_space<vmem>>, vector<1x512xf32>
    %8 = vector.broadcast %7 : vector<1x512xf32> to vector<128x512xf32>
    %9 = arith.addf %6, %8 : vector<128x512xf32>
    %10 = vector.shape_cast %9 : vector<128x512xf32> to vector<8x16x512xf32>
    %c0_7 = arith.constant 0 : index
    %c0_8 = arith.constant 0 : index
    %c0_9 = arith.constant 0 : index
    %11 = vector.load %arg11[%c0_7, %c0_8, %c0_9] : memref<8x16x512xf32, #tpu.memory_space<vmem>>, vector<8x16x512xf32>
    tpu.vector_store %arg11[%c0_7, %c0_8, %c0_9], %10 {strides = array<i32>} : memref<8x16x512xf32, #tpu.memory_space<vmem>>, vector<8x16x512xf32>,
    %c0_10 = arith.constant 0 : index
    %c0_11 = arith.constant 0 : index
    %12 = vector.load %arg4[%c0_10, %c0_11] : memref<128x512xbf16, #tpu.memory_space<vmem>>, vector<128x512xbf16>
    %c0_12 = arith.constant 0 : index
    %c0_13 = arith.constant 0 : index
    %13 = vector.load %arg9[%c0_12, %c0_13] : memref<16x128xf32, #tpu.memory_space<vmem>>, vector<16x128xf32>
    %c0_14 = arith.constant 0 : index
    %c0_15 = arith.constant 0 : index
    %14 = vector.load %arg10[%c0_14, %c0_15] : memref<16x128xf32, #tpu.memory_space<vmem>>, vector<16x128xf32>
    %c0_i32_16 = arith.constant 0 : i32
    %15 = arith.index_cast %c0_i32_16 : i32 to index
    %c0_17 = arith.constant 0 : index
    %c0_18 = arith.constant 0 : index
    %16 = vector.load %arg11[%15, %c0_17, %c0_18] : memref<8x16x512xf32, #tpu.memory_space<vmem>>, vector<1x16x512xf32>
    %17 = vector.shape_cast %16 : vector<1x16x512xf32> to vector<16x512xf32>
    %18 = arith.truncf %13 : vector<16x128xf32> to vector<16x128xbf16>
    %cst_19 = arith.constant dense<0.000000e+00> : vector<16x512xf32>
    %19 = tpu.matmul %18, %12, %cst_19 {dimension_numbers = #tpu.dot_dimension_numbers<[1], [0], [0], [1], [0, 0, 1, 1], [], []>} : vector<16x128xbf16>, vector<128x512xbf16>, vector<16x512xf32> -> vector<16x512xf32>
    %20 = arith.addf %17, %19 : vector<16x512xf32>
    %21 = vector.extract_strided_slice %20 {offsets = [0, 0], sizes = [16, 128], strides = [1, 1]} : vector<16x512xf32> to vector<16x128xf32>
    %cst_20 = arith.constant 5.000000e-01 : f32
    %22 = vector.broadcast %cst_20 : f32 to vector<16x128xf32>
    %23 = arith.mulf %22, %21 : vector<16x128xf32>
    %24 = math.tanh %23 : vector<16x128xf32>
    %cst_21 = arith.constant 5.000000e-01 : f32
    %25 = vector.broadcast %cst_21 : f32 to vector<16x128xf32>
    %26 = arith.mulf %25, %24 : vector<16x128xf32>
    %cst_22 = arith.constant 5.000000e-01 : f32
    %27 = vector.broadcast %cst_22 : f32 to vector<16x128xf32>
    %28 = arith.addf %26, %27 : vector<16x128xf32>
    %29 = vector.extract_strided_slice %20 {offsets = [0, 128], sizes = [16, 128], strides = [1, 1]} : vector<16x512xf32> to vector<16x128xf32>
    %cst_23 = arith.constant 5.000000e-01 : f32
    %30 = vector.broadcast %cst_23 : f32 to vector<16x128xf32>
    %31 = arith.mulf %30, %29 : vector<16x128xf32>
    %32 = math.tanh %31 : vector<16x128xf32>
    %cst_24 = arith.constant 5.000000e-01 : f32
    %33 = vector.broadcast %cst_24 : f32 to vector<16x128xf32>
    %34 = arith.mulf %33, %32 : vector<16x128xf32>
    %cst_25 = arith.constant 5.000000e-01 : f32
    %35 = vector.broadcast %cst_25 : f32 to vector<16x128xf32>
    %36 = arith.addf %34, %35 : vector<16x128xf32>
    %37 = vector.extract_strided_slice %20 {offsets = [0, 256], sizes = [16, 128], strides = [1, 1]} : vector<16x512xf32> to vector<16x128xf32>
    %38 = math.tanh %37 : vector<16x128xf32>
    %39 = vector.extract_strided_slice %20 {offsets = [0, 384], sizes = [16, 128], strides = [1, 1]} : vector<16x512xf32> to vector<16x128xf32>
    %cst_26 = arith.constant 5.000000e-01 : f32
    %40 = vector.broadcast %cst_26 : f32 to vector<16x128xf32>
    %41 = arith.mulf %40, %39 : vector<16x128xf32>
    %42 = math.tanh %41 : vector<16x128xf32>
    %cst_27 = arith.constant 5.000000e-01 : f32
    %43 = vector.broadcast %cst_27 : f32 to vector<16x128xf32>
    %44 = arith.mulf %43, %42 : vector<16x128xf32>
    %cst_28 = arith.constant 5.000000e-01 : f32
    %45 = vector.broadcast %cst_28 : f32 to vector<16x128xf32>
    %46 = arith.addf %44, %45 : vector<16x128xf32>
    %47 = arith.mulf %36, %14 : vector<16x128xf32>
    %48 = arith.mulf %28, %38 : vector<16x128xf32>
    %49 = arith.addf %47, %48 : vector<16x128xf32>
    %50 = math.tanh %49 : vector<16x128xf32>
    %51 = arith.mulf %46, %50 : vector<16x128xf32>
    %c1_i32 = arith.constant 1 : i32
    %52 = arith.index_cast %c1_i32 : i32 to index
    %c0_29 = arith.constant 0 : index
    %c0_30 = arith.constant 0 : index
    %53 = vector.load %arg11[%52, %c0_29, %c0_30] : memref<8x16x512xf32, #tpu.memory_space<vmem>>, vector<1x16x512xf32>
    %54 = vector.shape_cast %53 : vector<1x16x512xf32> to vector<16x512xf32>
    %55 = arith.truncf %51 : vector<16x128xf32> to vector<16x128xbf16>
    %cst_31 = arith.constant dense<0.000000e+00> : vector<16x512xf32>
    %56 = tpu.matmul %55, %12, %cst_31 {dimension_numbers = #tpu.dot_dimension_numbers<[1], [0], [0], [1], [0, 0, 1, 1], [], []>} : vector<16x128xbf16>, vector<128x512xbf16>, vector<16x512xf32> -> vector<16x512xf32>
    %57 = arith.addf %54, %56 : vector<16x512xf32>
    %58 = vector.extract_strided_slice %57 {offsets = [0, 0], sizes = [16, 128], strides = [1, 1]} : vector<16x512xf32> to vector<16x128xf32>
    %cst_32 = arith.constant 5.000000e-01 : f32
    %59 = vector.broadcast %cst_32 : f32 to vector<16x128xf32>
    %60 = arith.mulf %59, %58 : vector<16x128xf32>
    %61 = math.tanh %60 : vector<16x128xf32>
    %cst_33 = arith.constant 5.000000e-01 : f32
    %62 = vector.broadcast %cst_33 : f32 to vector<16x128xf32>
    %63 = arith.mulf %62, %61 : vector<16x128xf32>
    %cst_34 = arith.constant 5.000000e-01 : f32
    %64 = vector.broadcast %cst_34 : f32 to vector<16x128xf32>
    %65 = arith.addf %63, %64 : vector<16x128xf32>
    %66 = vector.extract_strided_slice %57 {offsets = [0, 128], sizes = [16, 128], strides = [1, 1]} : vector<16x512xf32> to vector<16x128xf32>
    %cst_35 = arith.constant 5.000000e-01 : f32
    %67 = vector.broadcast %cst_35 : f32 to vector<16x128xf32>
    %68 = arith.mulf %67, %66 : vector<16x128xf32>
    %69 = math.tanh %68 : vector<16x128xf32>
    %cst_36 = arith.constant 5.000000e-01 : f32
    %70 = vector.broadcast %cst_36 : f32 to vector<16x128xf32>
    %71 = arith.mulf %70, %69 : vector<16x128xf32>
    %cst_37 = arith.constant 5.000000e-01 : f32
    %72 = vector.broadcast %cst_37 : f32 to vector<16x128xf32>
    %73 = arith.addf %71, %72 : vector<16x128xf32>
    %74 = vector.extract_strided_slice %57 {offsets = [0, 256], sizes = [16, 128], strides = [1, 1]} : vector<16x512xf32> to vector<16x128xf32>
    %75 = math.tanh %74 : vector<16x128xf32>
    %76 = vector.extract_strided_slice %57 {offsets = [0, 384], sizes = [16, 128], strides = [1, 1]} : vector<16x512xf32> to vector<16x128xf32>
    %cst_38 = arith.constant 5.000000e-01 : f32
    %77 = vector.broadcast %cst_38 : f32 to vector<16x128xf32>
    %78 = arith.mulf %77, %76 : vector<16x128xf32>
    %79 = math.tanh %78 : vector<16x128xf32>
    %cst_39 = arith.constant 5.000000e-01 : f32
    %80 = vector.broadcast %cst_39 : f32 to vector<16x128xf32>
    %81 = arith.mulf %80, %79 : vector<16x128xf32>
    %cst_40 = arith.constant 5.000000e-01 : f32
    %82 = vector.broadcast %cst_40 : f32 to vector<16x128xf32>
    %83 = arith.addf %81, %82 : vector<16x128xf32>
    %84 = arith.mulf %73, %49 : vector<16x128xf32>
    %85 = arith.mulf %65, %75 : vector<16x128xf32>
    %86 = arith.addf %84, %85 : vector<16x128xf32>
    %87 = math.tanh %86 : vector<16x128xf32>
    %88 = arith.mulf %83, %87 : vector<16x128xf32>
    %c2_i32 = arith.constant 2 : i32
    %89 = arith.index_cast %c2_i32 : i32 to index
    %c0_41 = arith.constant 0 : index
    %c0_42 = arith.constant 0 : index
    %90 = vector.load %arg11[%89, %c0_41, %c0_42] : memref<8x16x512xf32, #tpu.memory_space<vmem>>, vector<1x16x512xf32>
    %91 = vector.shape_cast %90 : vector<1x16x512xf32> to vector<16x512xf32>
    %92 = arith.truncf %88 : vector<16x128xf32> to vector<16x128xbf16>
    %cst_43 = arith.constant dense<0.000000e+00> : vector<16x512xf32>
    %93 = tpu.matmul %92, %12, %cst_43 {dimension_numbers = #tpu.dot_dimension_numbers<[1], [0], [0], [1], [0, 0, 1, 1], [], []>} : vector<16x128xbf16>, vector<128x512xbf16>, vector<16x512xf32> -> vector<16x512xf32>
    %94 = arith.addf %91, %93 : vector<16x512xf32>
    %95 = vector.extract_strided_slice %94 {offsets = [0, 0], sizes = [16, 128], strides = [1, 1]} : vector<16x512xf32> to vector<16x128xf32>
    %cst_44 = arith.constant 5.000000e-01 : f32
    %96 = vector.broadcast %cst_44 : f32 to vector<16x128xf32>
    %97 = arith.mulf %96, %95 : vector<16x128xf32>
    %98 = math.tanh %97 : vector<16x128xf32>
    %cst_45 = arith.constant 5.000000e-01 : f32
    %99 = vector.broadcast %cst_45 : f32 to vector<16x128xf32>
    %100 = arith.mulf %99, %98 : vector<16x128xf32>
    %cst_46 = arith.constant 5.000000e-01 : f32
    %101 = vector.broadcast %cst_46 : f32 to vector<16x128xf32>
    %102 = arith.addf %100, %101 : vector<16x128xf32>
    %103 = vector.extract_strided_slice %94 {offsets = [0, 128], sizes = [16, 128], strides = [1, 1]} : vector<16x512xf32> to vector<16x128xf32>
    %cst_47 = arith.constant 5.000000e-01 : f32
    %104 = vector.broadcast %cst_47 : f32 to vector<16x128xf32>
    %105 = arith.mulf %104, %103 : vector<16x128xf32>
    %106 = math.tanh %105 : vector<16x128xf32>
    %cst_48 = arith.constant 5.000000e-01 : f32
    %107 = vector.broadcast %cst_48 : f32 to vector<16x128xf32>
    %108 = arith.mulf %107, %106 : vector<16x128xf32>
    %cst_49 = arith.constant 5.000000e-01 : f32
    %109 = vector.broadcast %cst_49 : f32 to vector<16x128xf32>
    %110 = arith.addf %108, %109 : vector<16x128xf32>
    %111 = vector.extract_strided_slice %94 {offsets = [0, 256], sizes = [16, 128], strides = [1, 1]} : vector<16x512xf32> to vector<16x128xf32>
    %112 = math.tanh %111 : vector<16x128xf32>
    %113 = vector.extract_strided_slice %94 {offsets = [0, 384], sizes = [16, 128], strides = [1, 1]} : vector<16x512xf32> to vector<16x128xf32>
    %cst_50 = arith.constant 5.000000e-01 : f32
    %114 = vector.broadcast %cst_50 : f32 to vector<16x128xf32>
    %115 = arith.mulf %114, %113 : vector<16x128xf32>
    %116 = math.tanh %115 : vector<16x128xf32>
    %cst_51 = arith.constant 5.000000e-01 : f32
    %117 = vector.broadcast %cst_51 : f32 to vector<16x128xf32>
    %118 = arith.mulf %117, %116 : vector<16x128xf32>
    %cst_52 = arith.constant 5.000000e-01 : f32
    %119 = vector.broadcast %cst_52 : f32 to vector<16x128xf32>
    %120 = arith.addf %118, %119 : vector<16x128xf32>
    %121 = arith.mulf %110, %86 : vector<16x128xf32>
    %122 = arith.mulf %102, %112 : vector<16x128xf32>
    %123 = arith.addf %121, %122 : vector<16x128xf32>
    %124 = math.tanh %123 : vector<16x128xf32>
    %125 = arith.mulf %120, %124 : vector<16x128xf32>
    %c3_i32 = arith.constant 3 : i32
    %126 = arith.index_cast %c3_i32 : i32 to index
    %c0_53 = arith.constant 0 : index
    %c0_54 = arith.constant 0 : index
    %127 = vector.load %arg11[%126, %c0_53, %c0_54] : memref<8x16x512xf32, #tpu.memory_space<vmem>>, vector<1x16x512xf32>
    %128 = vector.shape_cast %127 : vector<1x16x512xf32> to vector<16x512xf32>
    %129 = arith.truncf %125 : vector<16x128xf32> to vector<16x128xbf16>
    %cst_55 = arith.constant dense<0.000000e+00> : vector<16x512xf32>
    %130 = tpu.matmul %129, %12, %cst_55 {dimension_numbers = #tpu.dot_dimension_numbers<[1], [0], [0], [1], [0, 0, 1, 1], [], []>} : vector<16x128xbf16>, vector<128x512xbf16>, vector<16x512xf32> -> vector<16x512xf32>
    %131 = arith.addf %128, %130 : vector<16x512xf32>
    %132 = vector.extract_strided_slice %131 {offsets = [0, 0], sizes = [16, 128], strides = [1, 1]} : vector<16x512xf32> to vector<16x128xf32>
    %cst_56 = arith.constant 5.000000e-01 : f32
    %133 = vector.broadcast %cst_56 : f32 to vector<16x128xf32>
    %134 = arith.mulf %133, %132 : vector<16x128xf32>
    %135 = math.tanh %134 : vector<16x128xf32>
    %cst_57 = arith.constant 5.000000e-01 : f32
    %136 = vector.broadcast %cst_57 : f32 to vector<16x128xf32>
    %137 = arith.mulf %136, %135 : vector<16x128xf32>
    %cst_58 = arith.constant 5.000000e-01 : f32
    %138 = vector.broadcast %cst_58 : f32 to vector<16x128xf32>
    %139 = arith.addf %137, %138 : vector<16x128xf32>
    %140 = vector.extract_strided_slice %131 {offsets = [0, 128], sizes = [16, 128], strides = [1, 1]} : vector<16x512xf32> to vector<16x128xf32>
    %cst_59 = arith.constant 5.000000e-01 : f32
    %141 = vector.broadcast %cst_59 : f32 to vector<16x128xf32>
    %142 = arith.mulf %141, %140 : vector<16x128xf32>
    %143 = math.tanh %142 : vector<16x128xf32>
    %cst_60 = arith.constant 5.000000e-01 : f32
    %144 = vector.broadcast %cst_60 : f32 to vector<16x128xf32>
    %145 = arith.mulf %144, %143 : vector<16x128xf32>
    %cst_61 = arith.constant 5.000000e-01 : f32
    %146 = vector.broadcast %cst_61 : f32 to vector<16x128xf32>
    %147 = arith.addf %145, %146 : vector<16x128xf32>
    %148 = vector.extract_strided_slice %131 {offsets = [0, 256], sizes = [16, 128], strides = [1, 1]} : vector<16x512xf32> to vector<16x128xf32>
    %149 = math.tanh %148 : vector<16x128xf32>
    %150 = vector.extract_strided_slice %131 {offsets = [0, 384], sizes = [16, 128], strides = [1, 1]} : vector<16x512xf32> to vector<16x128xf32>
    %cst_62 = arith.constant 5.000000e-01 : f32
    %151 = vector.broadcast %cst_62 : f32 to vector<16x128xf32>
    %152 = arith.mulf %151, %150 : vector<16x128xf32>
    %153 = math.tanh %152 : vector<16x128xf32>
    %cst_63 = arith.constant 5.000000e-01 : f32
    %154 = vector.broadcast %cst_63 : f32 to vector<16x128xf32>
    %155 = arith.mulf %154, %153 : vector<16x128xf32>
    %cst_64 = arith.constant 5.000000e-01 : f32
    %156 = vector.broadcast %cst_64 : f32 to vector<16x128xf32>
    %157 = arith.addf %155, %156 : vector<16x128xf32>
    %158 = arith.mulf %147, %123 : vector<16x128xf32>
    %159 = arith.mulf %139, %149 : vector<16x128xf32>
    %160 = arith.addf %158, %159 : vector<16x128xf32>
    %161 = math.tanh %160 : vector<16x128xf32>
    %162 = arith.mulf %157, %161 : vector<16x128xf32>
    %c4_i32 = arith.constant 4 : i32
    %163 = arith.index_cast %c4_i32 : i32 to index
    %c0_65 = arith.constant 0 : index
    %c0_66 = arith.constant 0 : index
    %164 = vector.load %arg11[%163, %c0_65, %c0_66] : memref<8x16x512xf32, #tpu.memory_space<vmem>>, vector<1x16x512xf32>
    %165 = vector.shape_cast %164 : vector<1x16x512xf32> to vector<16x512xf32>
    %166 = arith.truncf %162 : vector<16x128xf32> to vector<16x128xbf16>
    %cst_67 = arith.constant dense<0.000000e+00> : vector<16x512xf32>
    %167 = tpu.matmul %166, %12, %cst_67 {dimension_numbers = #tpu.dot_dimension_numbers<[1], [0], [0], [1], [0, 0, 1, 1], [], []>} : vector<16x128xbf16>, vector<128x512xbf16>, vector<16x512xf32> -> vector<16x512xf32>
    %168 = arith.addf %165, %167 : vector<16x512xf32>
    %169 = vector.extract_strided_slice %168 {offsets = [0, 0], sizes = [16, 128], strides = [1, 1]} : vector<16x512xf32> to vector<16x128xf32>
    %cst_68 = arith.constant 5.000000e-01 : f32
    %170 = vector.broadcast %cst_68 : f32 to vector<16x128xf32>
    %171 = arith.mulf %170, %169 : vector<16x128xf32>
    %172 = math.tanh %171 : vector<16x128xf32>
    %cst_69 = arith.constant 5.000000e-01 : f32
    %173 = vector.broadcast %cst_69 : f32 to vector<16x128xf32>
    %174 = arith.mulf %173, %172 : vector<16x128xf32>
    %cst_70 = arith.constant 5.000000e-01 : f32
    %175 = vector.broadcast %cst_70 : f32 to vector<16x128xf32>
    %176 = arith.addf %174, %175 : vector<16x128xf32>
    %177 = vector.extract_strided_slice %168 {offsets = [0, 128], sizes = [16, 128], strides = [1, 1]} : vector<16x512xf32> to vector<16x128xf32>
    %cst_71 = arith.constant 5.000000e-01 : f32
    %178 = vector.broadcast %cst_71 : f32 to vector<16x128xf32>
    %179 = arith.mulf %178, %177 : vector<16x128xf32>
    %180 = math.tanh %179 : vector<16x128xf32>
    %cst_72 = arith.constant 5.000000e-01 : f32
    %181 = vector.broadcast %cst_72 : f32 to vector<16x128xf32>
    %182 = arith.mulf %181, %180 : vector<16x128xf32>
    %cst_73 = arith.constant 5.000000e-01 : f32
    %183 = vector.broadcast %cst_73 : f32 to vector<16x128xf32>
    %184 = arith.addf %182, %183 : vector<16x128xf32>
    %185 = vector.extract_strided_slice %168 {offsets = [0, 256], sizes = [16, 128], strides = [1, 1]} : vector<16x512xf32> to vector<16x128xf32>
    %186 = math.tanh %185 : vector<16x128xf32>
    %187 = vector.extract_strided_slice %168 {offsets = [0, 384], sizes = [16, 128], strides = [1, 1]} : vector<16x512xf32> to vector<16x128xf32>
    %cst_74 = arith.constant 5.000000e-01 : f32
    %188 = vector.broadcast %cst_74 : f32 to vector<16x128xf32>
    %189 = arith.mulf %188, %187 : vector<16x128xf32>
    %190 = math.tanh %189 : vector<16x128xf32>
    %cst_75 = arith.constant 5.000000e-01 : f32
    %191 = vector.broadcast %cst_75 : f32 to vector<16x128xf32>
    %192 = arith.mulf %191, %190 : vector<16x128xf32>
    %cst_76 = arith.constant 5.000000e-01 : f32
    %193 = vector.broadcast %cst_76 : f32 to vector<16x128xf32>
    %194 = arith.addf %192, %193 : vector<16x128xf32>
    %195 = arith.mulf %184, %160 : vector<16x128xf32>
    %196 = arith.mulf %176, %186 : vector<16x128xf32>
    %197 = arith.addf %195, %196 : vector<16x128xf32>
    %198 = math.tanh %197 : vector<16x128xf32>
    %199 = arith.mulf %194, %198 : vector<16x128xf32>
    %c5_i32 = arith.constant 5 : i32
    %200 = arith.index_cast %c5_i32 : i32 to index
    %c0_77 = arith.constant 0 : index
    %c0_78 = arith.constant 0 : index
    %201 = vector.load %arg11[%200, %c0_77, %c0_78] : memref<8x16x512xf32, #tpu.memory_space<vmem>>, vector<1x16x512xf32>
    %202 = vector.shape_cast %201 : vector<1x16x512xf32> to vector<16x512xf32>
    %203 = arith.truncf %199 : vector<16x128xf32> to vector<16x128xbf16>
    %cst_79 = arith.constant dense<0.000000e+00> : vector<16x512xf32>
    %204 = tpu.matmul %203, %12, %cst_79 {dimension_numbers = #tpu.dot_dimension_numbers<[1], [0], [0], [1], [0, 0, 1, 1], [], []>} : vector<16x128xbf16>, vector<128x512xbf16>, vector<16x512xf32> -> vector<16x512xf32>
    %205 = arith.addf %202, %204 : vector<16x512xf32>
    %206 = vector.extract_strided_slice %205 {offsets = [0, 0], sizes = [16, 128], strides = [1, 1]} : vector<16x512xf32> to vector<16x128xf32>
    %cst_80 = arith.constant 5.000000e-01 : f32
    %207 = vector.broadcast %cst_80 : f32 to vector<16x128xf32>
    %208 = arith.mulf %207, %206 : vector<16x128xf32>
    %209 = math.tanh %208 : vector<16x128xf32>
    %cst_81 = arith.constant 5.000000e-01 : f32
    %210 = vector.broadcast %cst_81 : f32 to vector<16x128xf32>
    %211 = arith.mulf %210, %209 : vector<16x128xf32>
    %cst_82 = arith.constant 5.000000e-01 : f32
    %212 = vector.broadcast %cst_82 : f32 to vector<16x128xf32>
    %213 = arith.addf %211, %212 : vector<16x128xf32>
    %214 = vector.extract_strided_slice %205 {offsets = [0, 128], sizes = [16, 128], strides = [1, 1]} : vector<16x512xf32> to vector<16x128xf32>
    %cst_83 = arith.constant 5.000000e-01 : f32
    %215 = vector.broadcast %cst_83 : f32 to vector<16x128xf32>
    %216 = arith.mulf %215, %214 : vector<16x128xf32>
    %217 = math.tanh %216 : vector<16x128xf32>
    %cst_84 = arith.constant 5.000000e-01 : f32
    %218 = vector.broadcast %cst_84 : f32 to vector<16x128xf32>
    %219 = arith.mulf %218, %217 : vector<16x128xf32>
    %cst_85 = arith.constant 5.000000e-01 : f32
    %220 = vector.broadcast %cst_85 : f32 to vector<16x128xf32>
    %221 = arith.addf %219, %220 : vector<16x128xf32>
    %222 = vector.extract_strided_slice %205 {offsets = [0, 256], sizes = [16, 128], strides = [1, 1]} : vector<16x512xf32> to vector<16x128xf32>
    %223 = math.tanh %222 : vector<16x128xf32>
    %224 = vector.extract_strided_slice %205 {offsets = [0, 384], sizes = [16, 128], strides = [1, 1]} : vector<16x512xf32> to vector<16x128xf32>
    %cst_86 = arith.constant 5.000000e-01 : f32
    %225 = vector.broadcast %cst_86 : f32 to vector<16x128xf32>
    %226 = arith.mulf %225, %224 : vector<16x128xf32>
    %227 = math.tanh %226 : vector<16x128xf32>
    %cst_87 = arith.constant 5.000000e-01 : f32
    %228 = vector.broadcast %cst_87 : f32 to vector<16x128xf32>
    %229 = arith.mulf %228, %227 : vector<16x128xf32>
    %cst_88 = arith.constant 5.000000e-01 : f32
    %230 = vector.broadcast %cst_88 : f32 to vector<16x128xf32>
    %231 = arith.addf %229, %230 : vector<16x128xf32>
    %232 = arith.mulf %221, %197 : vector<16x128xf32>
    %233 = arith.mulf %213, %223 : vector<16x128xf32>
    %234 = arith.addf %232, %233 : vector<16x128xf32>
    %235 = math.tanh %234 : vector<16x128xf32>
    %236 = arith.mulf %231, %235 : vector<16x128xf32>
    %c6_i32 = arith.constant 6 : i32
    %237 = arith.index_cast %c6_i32 : i32 to index
    %c0_89 = arith.constant 0 : index
    %c0_90 = arith.constant 0 : index
    %238 = vector.load %arg11[%237, %c0_89, %c0_90] : memref<8x16x512xf32, #tpu.memory_space<vmem>>, vector<1x16x512xf32>
    %239 = vector.shape_cast %238 : vector<1x16x512xf32> to vector<16x512xf32>
    %240 = arith.truncf %236 : vector<16x128xf32> to vector<16x128xbf16>
    %cst_91 = arith.constant dense<0.000000e+00> : vector<16x512xf32>
    %241 = tpu.matmul %240, %12, %cst_91 {dimension_numbers = #tpu.dot_dimension_numbers<[1], [0], [0], [1], [0, 0, 1, 1], [], []>} : vector<16x128xbf16>, vector<128x512xbf16>, vector<16x512xf32> -> vector<16x512xf32>
    %242 = arith.addf %239, %241 : vector<16x512xf32>
    %243 = vector.extract_strided_slice %242 {offsets = [0, 0], sizes = [16, 128], strides = [1, 1]} : vector<16x512xf32> to vector<16x128xf32>
    %cst_92 = arith.constant 5.000000e-01 : f32
    %244 = vector.broadcast %cst_92 : f32 to vector<16x128xf32>
    %245 = arith.mulf %244, %243 : vector<16x128xf32>
    %246 = math.tanh %245 : vector<16x128xf32>
    %cst_93 = arith.constant 5.000000e-01 : f32
    %247 = vector.broadcast %cst_93 : f32 to vector<16x128xf32>
    %248 = arith.mulf %247, %246 : vector<16x128xf32>
    %cst_94 = arith.constant 5.000000e-01 : f32
    %249 = vector.broadcast %cst_94 : f32 to vector<16x128xf32>
    %250 = arith.addf %248, %249 : vector<16x128xf32>
    %251 = vector.extract_strided_slice %242 {offsets = [0, 128], sizes = [16, 128], strides = [1, 1]} : vector<16x512xf32> to vector<16x128xf32>
    %cst_95 = arith.constant 5.000000e-01 : f32
    %252 = vector.broadcast %cst_95 : f32 to vector<16x128xf32>
    %253 = arith.mulf %252, %251 : vector<16x128xf32>
    %254 = math.tanh %253 : vector<16x128xf32>
    %cst_96 = arith.constant 5.000000e-01 : f32
    %255 = vector.broadcast %cst_96 : f32 to vector<16x128xf32>
    %256 = arith.mulf %255, %254 : vector<16x128xf32>
    %cst_97 = arith.constant 5.000000e-01 : f32
    %257 = vector.broadcast %cst_97 : f32 to vector<16x128xf32>
    %258 = arith.addf %256, %257 : vector<16x128xf32>
    %259 = vector.extract_strided_slice %242 {offsets = [0, 256], sizes = [16, 128], strides = [1, 1]} : vector<16x512xf32> to vector<16x128xf32>
    %260 = math.tanh %259 : vector<16x128xf32>
    %261 = vector.extract_strided_slice %242 {offsets = [0, 384], sizes = [16, 128], strides = [1, 1]} : vector<16x512xf32> to vector<16x128xf32>
    %cst_98 = arith.constant 5.000000e-01 : f32
    %262 = vector.broadcast %cst_98 : f32 to vector<16x128xf32>
    %263 = arith.mulf %262, %261 : vector<16x128xf32>
    %264 = math.tanh %263 : vector<16x128xf32>
    %cst_99 = arith.constant 5.000000e-01 : f32
    %265 = vector.broadcast %cst_99 : f32 to vector<16x128xf32>
    %266 = arith.mulf %265, %264 : vector<16x128xf32>
    %cst_100 = arith.constant 5.000000e-01 : f32
    %267 = vector.broadcast %cst_100 : f32 to vector<16x128xf32>
    %268 = arith.addf %266, %267 : vector<16x128xf32>
    %269 = arith.mulf %258, %234 : vector<16x128xf32>
    %270 = arith.mulf %250, %260 : vector<16x128xf32>
    %271 = arith.addf %269, %270 : vector<16x128xf32>
    %272 = math.tanh %271 : vector<16x128xf32>
    %273 = arith.mulf %268, %272 : vector<16x128xf32>
    %c7_i32 = arith.constant 7 : i32
    %274 = arith.index_cast %c7_i32 : i32 to index
    %c0_101 = arith.constant 0 : index
    %c0_102 = arith.constant 0 : index
    %275 = vector.load %arg11[%274, %c0_101, %c0_102] : memref<8x16x512xf32, #tpu.memory_space<vmem>>, vector<1x16x512xf32>
    %276 = vector.shape_cast %275 : vector<1x16x512xf32> to vector<16x512xf32>
    %277 = arith.truncf %273 : vector<16x128xf32> to vector<16x128xbf16>
    %cst_103 = arith.constant dense<0.000000e+00> : vector<16x512xf32>
    %278 = tpu.matmul %277, %12, %cst_103 {dimension_numbers = #tpu.dot_dimension_numbers<[1], [0], [0], [1], [0, 0, 1, 1], [], []>} : vector<16x128xbf16>, vector<128x512xbf16>, vector<16x512xf32> -> vector<16x512xf32>
    %279 = arith.addf %276, %278 : vector<16x512xf32>
    %280 = vector.extract_strided_slice %279 {offsets = [0, 0], sizes = [16, 128], strides = [1, 1]} : vector<16x512xf32> to vector<16x128xf32>
    %cst_104 = arith.constant 5.000000e-01 : f32
    %281 = vector.broadcast %cst_104 : f32 to vector<16x128xf32>
    %282 = arith.mulf %281, %280 : vector<16x128xf32>
    %283 = math.tanh %282 : vector<16x128xf32>
    %cst_105 = arith.constant 5.000000e-01 : f32
    %284 = vector.broadcast %cst_105 : f32 to vector<16x128xf32>
    %285 = arith.mulf %284, %283 : vector<16x128xf32>
    %cst_106 = arith.constant 5.000000e-01 : f32
    %286 = vector.broadcast %cst_106 : f32 to vector<16x128xf32>
    %287 = arith.addf %285, %286 : vector<16x128xf32>
    %288 = vector.extract_strided_slice %279 {offsets = [0, 128], sizes = [16, 128], strides = [1, 1]} : vector<16x512xf32> to vector<16x128xf32>
    %cst_107 = arith.constant 5.000000e-01 : f32
    %289 = vector.broadcast %cst_107 : f32 to vector<16x128xf32>
    %290 = arith.mulf %289, %288 : vector<16x128xf32>
    %291 = math.tanh %290 : vector<16x128xf32>
    %cst_108 = arith.constant 5.000000e-01 : f32
    %292 = vector.broadcast %cst_108 : f32 to vector<16x128xf32>
    %293 = arith.mulf %292, %291 : vector<16x128xf32>
    %cst_109 = arith.constant 5.000000e-01 : f32
    %294 = vector.broadcast %cst_109 : f32 to vector<16x128xf32>
    %295 = arith.addf %293, %294 : vector<16x128xf32>
    %296 = vector.extract_strided_slice %279 {offsets = [0, 256], sizes = [16, 128], strides = [1, 1]} : vector<16x512xf32> to vector<16x128xf32>
    %297 = math.tanh %296 : vector<16x128xf32>
    %298 = vector.extract_strided_slice %279 {offsets = [0, 384], sizes = [16, 128], strides = [1, 1]} : vector<16x512xf32> to vector<16x128xf32>
    %cst_110 = arith.constant 5.000000e-01 : f32
    %299 = vector.broadcast %cst_110 : f32 to vector<16x128xf32>
    %300 = arith.mulf %299, %298 : vector<16x128xf32>
    %301 = math.tanh %300 : vector<16x128xf32>
    %cst_111 = arith.constant 5.000000e-01 : f32
    %302 = vector.broadcast %cst_111 : f32 to vector<16x128xf32>
    %303 = arith.mulf %302, %301 : vector<16x128xf32>
    %cst_112 = arith.constant 5.000000e-01 : f32
    %304 = vector.broadcast %cst_112 : f32 to vector<16x128xf32>
    %305 = arith.addf %303, %304 : vector<16x128xf32>
    %306 = arith.mulf %295, %271 : vector<16x128xf32>
    %307 = arith.mulf %287, %297 : vector<16x128xf32>
    %308 = arith.addf %306, %307 : vector<16x128xf32>
    %309 = math.tanh %308 : vector<16x128xf32>
    %310 = arith.mulf %305, %309 : vector<16x128xf32>
    %c8_i32 = arith.constant 8 : i32
    %c0_113 = arith.constant 0 : index
    %c0_114 = arith.constant 0 : index
    %311 = vector.load %arg9[%c0_113, %c0_114] : memref<16x128xf32, #tpu.memory_space<vmem>>, vector<16x128xf32>
    tpu.vector_store %arg9[%c0_113, %c0_114], %310 {strides = array<i32>} : memref<16x128xf32, #tpu.memory_space<vmem>>, vector<16x128xf32>,
    %c0_115 = arith.constant 0 : index
    %c0_116 = arith.constant 0 : index
    %312 = vector.load %arg10[%c0_115, %c0_116] : memref<16x128xf32, #tpu.memory_space<vmem>>, vector<16x128xf32>
    tpu.vector_store %arg10[%c0_115, %c0_116], %308 {strides = array<i32>} : memref<16x128xf32, #tpu.memory_space<vmem>>, vector<16x128xf32>,
    %c0_i32_117 = arith.constant 0 : i32
    %313 = arith.cmpi eq, %arg1, %c0_i32_117 : i32
    %314 = arith.extui %313 : i1 to i32
    %c0_i32_118 = arith.constant 0 : i32
    %315 = arith.cmpi ne, %314, %c0_i32_118 : i32
    scf.if %315 {
      %316 = arith.truncf %310 : vector<16x128xf32> to vector<16x128xbf16>
      %c0_119 = arith.constant 0 : index
      %c0_120 = arith.constant 0 : index
      %317 = vector.load %arg6[%c0_119, %c0_120] : memref<128x128xbf16, #tpu.memory_space<vmem>>, vector<128x128xbf16>
      %cst_121 = arith.constant dense<0.000000e+00> : vector<16x128xf32>
      %318 = tpu.matmul %316, %317, %cst_121 {dimension_numbers = #tpu.dot_dimension_numbers<[1], [0], [0], [1], [0, 0, 1, 1], [], []>} : vector<16x128xbf16>, vector<128x128xbf16>, vector<16x128xf32> -> vector<16x128xf32>
      %c0_122 = arith.constant 0 : index
      %c0_123 = arith.constant 0 : index
      %319 = vector.load %arg7[%c0_122, %c0_123] : memref<1x128xf32, #tpu.memory_space<vmem>>, vector<1x128xf32>
      %320 = vector.broadcast %319 : vector<1x128xf32> to vector<16x128xf32>
      %321 = arith.addf %318, %320 : vector<16x128xf32>
      %c0_124 = arith.constant 0 : index
      %c0_125 = arith.constant 0 : index
      %322 = vector.load %arg8[%c0_124, %c0_125] : memref<16x128xf32, #tpu.memory_space<vmem>>, vector<16x128xf32>
      tpu.vector_store %arg8[%c0_124, %c0_125], %321 {strides = array<i32>} : memref<16x128xf32, #tpu.memory_space<vmem>>, vector<16x128xf32>,
    } else {
    }
    return
  }
  func.func @transform_0(%arg0: i32, %arg1: i32) -> (i32, i32, i32) {
    %c0_i32 = arith.constant 0 : i32
    %c0_i32_0 = arith.constant 0 : i32
    return %arg1, %arg0, %c0_i32 : i32, i32, i32
  }
  func.func @transform_1(%arg0: i32, %arg1: i32) -> (i32, i32) {
    %c0_i32 = arith.constant 0 : i32
    %c0_i32_0 = arith.constant 0 : i32
    %c0_i32_1 = arith.constant 0 : i32
    return %c0_i32, %c0_i32_0 : i32, i32
  }
  func.func @transform_2(%arg0: i32, %arg1: i32) -> (i32, i32) {
    %c0_i32 = arith.constant 0 : i32
    %c0_i32_0 = arith.constant 0 : i32
    %c0_i32_1 = arith.constant 0 : i32
    return %c0_i32, %c0_i32_0 : i32, i32
  }
  func.func @transform_3(%arg0: i32, %arg1: i32) -> (i32, i32) {
    %c0_i32 = arith.constant 0 : i32
    %c0_i32_0 = arith.constant 0 : i32
    %c0_i32_1 = arith.constant 0 : i32
    return %c0_i32, %c0_i32_0 : i32, i32
  }
  func.func @transform_4(%arg0: i32, %arg1: i32) -> (i32, i32) {
    %c0_i32 = arith.constant 0 : i32
    %c0_i32_0 = arith.constant 0 : i32
    %c0_i32_1 = arith.constant 0 : i32
    return %c0_i32, %c0_i32_0 : i32, i32
  }
  func.func @transform_5(%arg0: i32, %arg1: i32) -> (i32, i32) {
    %c0_i32 = arith.constant 0 : i32
    %c0_i32_0 = arith.constant 0 : i32
    %c0_i32_1 = arith.constant 0 : i32
    return %c0_i32, %c0_i32_0 : i32, i32
  }
  func.func @transform_6(%arg0: i32, %arg1: i32) -> (i32, i32) {
    %c0_i32 = arith.constant 0 : i32
    %c0_i32_0 = arith.constant 0 : i32
    return %arg0, %c0_i32 : i32, i32
  }
}

</mosaic_0001>

<llo_original>
// kernel: tpu_custom_call.1
$region0: #{tpu_custom_call.1}
  #allocation0 [shape = 'u32[]', space=smem, size = 0x4, offset = 0x4, fixed_abs, tag = 'smem constant byte address 0x4 - core index']
  #allocation1 [shape = 'u32[144,128]{1,0:T(1,128)}', space=vmem, size = 0x12000, scoped, tag = 'internal scratch']
  #allocation2 [shape = 'f32[16,128]{1,0:T(8,128)}', space=vmem, size = 0x2000, scoped, tag = 'scratch operand']
  #allocation3 [shape = 'f32[16,128]{1,0:T(8,128)}', space=vmem, size = 0x2000, scoped, tag = 'scratch operand']
  #allocation4 [shape = 'f32[8,16,512]{2,1,0:T(8,128)}', space=vmem, size = 0x40000, scoped, tag = 'scratch operand']
  %s0 = inlined_call_operand.vmem [shape: bf16[8,16,4], index: 0, kind: input, shape index: {}]
  %s1 = inlined_call_operand.vmem [shape: bf16[4,512], index: 1, kind: input, shape index: {}]
  %s2 = inlined_call_operand.hbm [shape: bf16[128,512], index: 2, kind: input, shape index: {}]
  %s3 = inlined_call_operand.vmem [shape: f32[1,512], index: 3, kind: input, shape index: {}]
  %s4 = inlined_call_operand.vmem [shape: bf16[128,128], index: 4, kind: input, shape index: {}]
  %s5 = inlined_call_operand.vmem [shape: f32[1,128], index: 5, kind: input, shape index: {}]
  %s6 = inlined_call_operand.hbm [shape: f32[16,128], index: 6, kind: output, shape index: {}]
  %s7 = sld [smem:[#allocation0]]
  $region46: #{tpu_custom_call.1} parent=0
    _
  %s9 = ssub.s32 1, %s7
  %s10 = scalar_select 0, %s9, %s7
  $region1: #{tpu_custom_call.1} parent=0
    #allocation5 [shape = 'u8[131072]{0}', space=vmem, size = 0x20000, scoped, tag = 'input window, operand 2, single buffered']
    #allocation6 [shape = 's32[1]{0}', space=sflag, size = 0x4, scoped, tag = 'scoped memory for tpu_custom_call.1']
    #allocation7 [shape = 's32[1]{0}', space=sflag, size = 0x4, scoped, tag = 'scoped memory for tpu_custom_call.1']
    #allocation8 [shape = 'u8[8192]{0}', space=vmem, size = 0x2000, scoped, tag = 'output window, operand 0, single buffered']
    %11 = vsyncpa [#allocation6], 0
    %12 = vsyncpa [#allocation7], 0
    // Predicated region
    $region2: #{tpu_custom_call.1} parent=1 // pred_check
      _
    $region3: #{tpu_custom_call.1} parent=1 // pred_check_branch
      %14 = sbr.rel (0) target = $region5
    $region4: #{tpu_custom_call.1} parent=1 // pred_region
      _
    $region5: #{tpu_custom_call.1} parent=1 // pred_fallthru
      _
    // Predicated region
    $region6: #{tpu_custom_call.1} parent=1 // pred_check
      _
    $region7: #{tpu_custom_call.1} parent=1 // pred_check_branch
      %16 = sbr.rel (0) target = $region9
    $region8: #{tpu_custom_call.1} parent=1 // pred_region
      _
    $region9: #{tpu_custom_call.1} parent=1 // pred_fallthru
      _
    // Predicated region
    $region10: #{tpu_custom_call.1} parent=1 // pred_check
      _
    $region11: #{tpu_custom_call.1} parent=1 // pred_check_branch
      %18 = sbr.rel (0) target = $region13
    $region12: #{tpu_custom_call.1} parent=1 // pred_region
      %s20 = ssub.s32 4096, 4096
      %21 = vsyncadd [#allocation6], %s20
      %s22 = sshll.u32 [#allocation5], 4
      %s23 = int_to_ptr.vmem [resolvable:$true] %s22
      %28 = dma.hbm_to_vmem [thread:$0]  %s2, 4096, %s23, [#allocation6], 256, 256, 16
    $region13: #{tpu_custom_call.1} parent=1 // pred_fallthru
      _
    // Predicated region
    $region14: #{tpu_custom_call.1} parent=1 // pred_check
      _
    $region15: #{tpu_custom_call.1} parent=1 // pred_check_branch
      %30 = sbr.rel (0) target = $region17
    $region16: #{tpu_custom_call.1} parent=1 // pred_region
      _
    $region17: #{tpu_custom_call.1} parent=1 // pred_fallthru
      _
    // Predicated region
    $region18: #{tpu_custom_call.1} parent=1 // pred_check
      _
    $region19: #{tpu_custom_call.1} parent=1 // pred_check_branch
      %32 = sbr.rel (0) target = $region21
    $region20: #{tpu_custom_call.1} parent=1 // pred_region
      _
    $region21: #{tpu_custom_call.1} parent=1 // pred_fallthru
      _
    // Predicated region
    $region22: #{tpu_custom_call.1} parent=1 // pred_check
      _
    $region23: #{tpu_custom_call.1} parent=1 // pred_check_branch
      %34 = sbr.rel (0) target = $region25
    $region24: #{tpu_custom_call.1} parent=1 // pred_region
      _
    $region25: #{tpu_custom_call.1} parent=1 // pred_fallthru
      _
    // Predicated region
    $region26: #{tpu_custom_call.1} parent=1 // pred_check
      _
    $region27: #{tpu_custom_call.1} parent=1 // pred_check_branch
      %36 = sbr.rel (0) target = $region29
    $region28: #{tpu_custom_call.1} parent=1 // pred_region
      %37 = dma.done [#allocation6], 4096
    $region29: #{tpu_custom_call.1} parent=1 // pred_fallthru
      _
    %p39 = scmp.eq.s32.totalorder 0, 0
    // Predicated region
    $region30: #{tpu_custom_call.1} parent=1 // pred_check
      %p40 = pneg %p39
    $region31: #{tpu_custom_call.1} parent=1 // pred_check_branch
      %42 = sbr.rel (%p40) target = $region33
    $region32: #{tpu_custom_call.1} parent=1 // pred_region
      %43 = vst [vmem:[#allocation2] sm:$0xff] 0.0
      %44 = vst [vmem:[#allocation2 + $0x8] sm:$0xff] 0.0
      %45 = vst [vmem:[#allocation3] sm:$0xff] 0.0
      %46 = vst [vmem:[#allocation3 + $0x8] sm:$0xff] 0.0
    $region33: #{tpu_custom_call.1} parent=1 // pred_fallthru
      _
    %v47 = vld [vmem:[%s0] sm:$0xf]
    %v48 = vld [vmem:[%s0 + $0x4] sm:$0xf]
    %v49 = vld [vmem:[%s0 + $0x8] sm:$0xf]
    %v50 = vld [vmem:[%s0 + $0xc] sm:$0xf]
    %v51 = vld [vmem:[%s0 + $0x10] sm:$0xf]
    %v52 = vld [vmem:[%s0 + $0x14] sm:$0xf]
    %v53 = vld [vmem:[%s0 + $0x18] sm:$0xf]
    %v54 = vld [vmem:[%s0 + $0x1c] sm:$0xf]
    %v55 = vld [vmem:[%s0 + $0x20] sm:$0xf]
    %v56 = vld [vmem:[%s0 + $0x24] sm:$0xf]
    %v57 = vld [vmem:[%s0 + $0x28] sm:$0xf]
    %v58 = vld [vmem:[%s0 + $0x2c] sm:$0xf]
    %v59 = vld [vmem:[%s0 + $0x30] sm:$0xf]
    %v60 = vld [vmem:[%s0 + $0x34] sm:$0xf]
    %v61 = vld [vmem:[%s0 + $0x38] sm:$0xf]
    %v62 = vld [vmem:[%s0 + $0x3c] sm:$0xf]
    %v63 = vld [vmem:[%s1] sm:$0xff]
    %v64 = vld [vmem:[%s3] sm:$0xf]
    %v66 = vlaneseq
    %v67 = vshrl.u32 %v66, 7
    %v68 = vsub.s32 0, %v67
    %v69 = vrot.slane %v64, %v68
    %v70 = vlaneseq
    %v71 = vshrl.u32 %v70, 7
    %v72 = vsub.s32 1, %v71
    %v73 = vrot.slane %v64, %v72
    %v74 = vlaneseq
    %v75 = vshrl.u32 %v74, 7
    %v76 = vsub.s32 2, %v75
    %v77 = vrot.slane %v64, %v76
    %v78 = vlaneseq
    %v79 = vshrl.u32 %v78, 7
    %v80 = vsub.s32 3, %v79
    %v81 = vrot.slane %v64, %v80
    %v102 = vunpack.c.l.b16 %v47
    %v103 = vunpack.c.l.b16 %v48
    %v104 = vunpack.c.l.b16 %v49
    %v105 = vunpack.c.l.b16 %v50
    %v106 = vunpack.c.l.b16 %v51
    %v107 = vunpack.c.l.b16 %v52
    %v108 = vunpack.c.l.b16 %v53
    %v109 = vunpack.c.l.b16 %v54
    %v110 = vunpack.c.l.b16 %v55
    %v111 = vunpack.c.l.b16 %v56
    %v112 = vunpack.c.l.b16 %v57
    %v113 = vunpack.c.l.b16 %v58
    %v114 = vunpack.c.l.b16 %v59
    %v115 = vunpack.c.l.b16 %v60
    %v116 = vunpack.c.l.b16 %v61
    %v117 = vunpack.c.l.b16 %v62
    %v118 = vpack.c.b16 %v103, %v102
    %v119 = vpack.c.b16 %v105, %v104
    %v120 = vpack.c.b16 %v107, %v106
    %v121 = vpack.c.b16 %v109, %v108
    %v122 = vpack.c.b16 %v111, %v110
    %v123 = vpack.c.b16 %v113, %v112
    %v124 = vpack.c.b16 %v115, %v114
    %v125 = vpack.c.b16 %v117, %v116
    %v127 = vcombine.high %v63, %v63
    %v129 = vunpack.c.l.s4 1983009808
    %v130 = vunpack.c.0.s8 %v129
    %v131 = vlaneseq
    %v132 = vshrl.u32 %v131, 7
    %v133 = vsub.s32 %v130, %v132
    %v134 = vrot.slane %v63, %v133
    %v136 = vunpack.c.l.s4 1983009808
    %v137 = vunpack.c.0.s8 %v136
    %v138 = vlaneseq
    %v139 = vshrl.u32 %v138, 7
    %v140 = vsub.s32 %v137, %v139
    %v141 = vrot.slane %v127, %v140
    %v142 = vcombine.high %v134, %v134
    %v143 = vcombine.high %v141, %v141
    %vm144 = vcmask 31744
    %v146 = vsel %vm144, %v118, 0
    %v149 = vsel %vm144, %v119, 0
    %v152 = vsel %vm144, %v120, 0
    %v155 = vsel %vm144, %v121, 0
    %v158 = vsel %vm144, %v122, 0
    %v161 = vsel %vm144, %v123, 0
    %v164 = vsel %vm144, %v124, 0
    %v167 = vsel %vm144, %v125, 0
    %vm169 = vcmask 1041408
    %v171 = vsel %vm169, %v134, 0
    %v174 = vsel %vm169, %v142, 0
    %v177 = vsel %vm169, %v141, 0
    %v180 = vsel %vm169, %v143, 0
    %182 = vmatprep.subr.bf16.mxu0 0
    %183 = vmatpush1.bf16.msra.mxu0 0
    %184 = vmatprep.subr.bf16.mxu0 0
    %185 = vmatpush1.bf16.msra.mxu0 0
    %186 = vmatprep.subr.bf16.mxu0 0
    %187 = vmatpush1.bf16.msra.mxu0 0
    %188 = vmatprep.subr.bf16.mxu0 0
    %189 = vmatpush1.bf16.msra.mxu0 0
    %190 = vmatprep.subr.bf16.mxu0 0
    %191 = vmatpush1.bf16.msra.mxu0 0
    %192 = vmatprep.subr.bf16.mxu0 0
    %193 = vmatpush1.bf16.msra.mxu0 0
    %194 = vmatprep.subr.bf16.mxu0 0
    %195 = vmatpush1.bf16.msra.mxu0 0
    %196 = vmatprep.subr.bf16.mxu0 %v174
    %197 = vmatpush1.bf16.msra.mxu0 %v171
    %198 = vmatprep.subr.bf16.mxu0 0
    %199 = vmatpush2.bf16.msra.mxu0 0
    %200 = vmatprep.subr.bf16.mxu0 0
    %201 = vmatpush2.bf16.msra.mxu0 0
    %202 = vmatprep.subr.bf16.mxu0 0
    %203 = vmatpush2.bf16.msra.mxu0 0
    %204 = vmatprep.subr.bf16.mxu0 0
    %205 = vmatpush2.bf16.msra.mxu0 0
    %206 = vmatprep.subr.bf16.mxu0 0
    %207 = vmatpush2.bf16.msra.mxu0 0
    %208 = vmatprep.subr.bf16.mxu0 0
    %209 = vmatpush2.bf16.msra.mxu0 0
    %210 = vmatprep.subr.bf16.mxu0 0
    %211 = vmatpush2.bf16.msra.mxu0 0
    %212 = vmatprep.subr.bf16.mxu0 0
    %213 = vmatpush2.bf16.msra.mxu0 0
    %214 = vmatprep.mubr.bf16.mxu0 0
    %215 = vmatmul.mubr.bf16.gmra.mxu0 %v146
    %v216 = vpop.f32.mrf.mxu0
    %v217 = vadd.f32 %v69, %v216
    %v218 = vpop.f32.mrf.mxu0
    %v219 = vadd.f32 %v73, %v218
    %v220 = vpop.f32.mrf.mxu0
    %v221 = vadd.f32 %v69, %v220
    %v222 = vpop.f32.mrf.mxu0
    %v223 = vadd.f32 %v73, %v222
    %224 = vmatprep.mubr.bf16.mxu0 0
    %225 = vmatmul.mubr.bf16.gmra.mxu0 %v149
    %v226 = vpop.f32.mrf.mxu0
    %v227 = vadd.f32 %v69, %v226
    %v228 = vpop.f32.mrf.mxu0
    %v229 = vadd.f32 %v73, %v228
    %v230 = vpop.f32.mrf.mxu0
    %v231 = vadd.f32 %v69, %v230
    %v232 = vpop.f32.mrf.mxu0
    %v233 = vadd.f32 %v73, %v232
    %234 = vmatprep.mubr.bf16.mxu0 0
    %235 = vmatmul.mubr.bf16.gmra.mxu0 %v152
    %v236 = vpop.f32.mrf.mxu0
    %v237 = vadd.f32 %v69, %v236
    %v238 = vpop.f32.mrf.mxu0
    %v239 = vadd.f32 %v73, %v238
    %v240 = vpop.f32.mrf.mxu0
    %v241 = vadd.f32 %v69, %v240
    %v242 = vpop.f32.mrf.mxu0
    %v243 = vadd.f32 %v73, %v242
    %244 = vmatprep.mubr.bf16.mxu0 0
    %245 = vmatmul.mubr.bf16.gmra.mxu0 %v155
    %v246 = vpop.f32.mrf.mxu0
    %v247 = vadd.f32 %v69, %v246
    %v248 = vpop.f32.mrf.mxu0
    %v249 = vadd.f32 %v73, %v248
    %v250 = vpop.f32.mrf.mxu0
    %v251 = vadd.f32 %v69, %v250
    %v252 = vpop.f32.mrf.mxu0
    %v253 = vadd.f32 %v73, %v252
    %254 = vmatprep.mubr.bf16.mxu0 0
    %255 = vmatmul.mubr.bf16.gmra.mxu0 %v158
    %v256 = vpop.f32.mrf.mxu0
    %v257 = vadd.f32 %v69, %v256
    %v258 = vpop.f32.mrf.mxu0
    %v259 = vadd.f32 %v73, %v258
    %v260 = vpop.f32.mrf.mxu0
    %v261 = vadd.f32 %v69, %v260
    %v262 = vpop.f32.mrf.mxu0
    %v263 = vadd.f32 %v73, %v262
    %264 = vmatprep.mubr.bf16.mxu0 0
    %265 = vmatmul.mubr.bf16.gmra.mxu0 %v161
    %v266 = vpop.f32.mrf.mxu0
    %v267 = vadd.f32 %v69, %v266
    %v268 = vpop.f32.mrf.mxu0
    %v269 = vadd.f32 %v73, %v268
    %v270 = vpop.f32.mrf.mxu0
    %v271 = vadd.f32 %v69, %v270
    %v272 = vpop.f32.mrf.mxu0
    %v273 = vadd.f32 %v73, %v272
    %274 = vmatprep.mubr.bf16.mxu0 0
    %275 = vmatmul.mubr.bf16.gmra.mxu0 %v164
    %v276 = vpop.f32.mrf.mxu0
    %v277 = vadd.f32 %v69, %v276
    %v278 = vpop.f32.mrf.mxu0
    %v279 = vadd.f32 %v73, %v278
    %v280 = vpop.f32.mrf.mxu0
    %v281 = vadd.f32 %v69, %v280
    %v282 = vpop.f32.mrf.mxu0
    %v283 = vadd.f32 %v73, %v282
    %284 = vmatprep.mubr.bf16.mxu0 0
    %285 = vmatmul.mubr.bf16.gmra.mxu0 %v167
    %v286 = vpop.f32.mrf.mxu0
    %v287 = vadd.f32 %v69, %v286
    %v288 = vpop.f32.mrf.mxu0
    %v289 = vadd.f32 %v73, %v288
    %v290 = vpop.f32.mrf.mxu0
    %v291 = vadd.f32 %v69, %v290
    %v292 = vpop.f32.mrf.mxu0
    %v293 = vadd.f32 %v73, %v292
    %294 = vdwg.mxu0
    %295 = vmatprep.subr.bf16.mxu0 0
    %296 = vmatpush1.bf16.msra.mxu0 0
    %297 = vmatprep.subr.bf16.mxu0 0
    %298 = vmatpush1.bf16.msra.mxu0 0
    %299 = vmatprep.subr.bf16.mxu0 0
    %300 = vmatpush1.bf16.msra.mxu0 0
    %301 = vmatprep.subr.bf16.mxu0 0
    %302 = vmatpush1.bf16.msra.mxu0 0
    %303 = vmatprep.subr.bf16.mxu0 0
    %304 = vmatpush1.bf16.msra.mxu0 0
    %305 = vmatprep.subr.bf16.mxu0 0
    %306 = vmatpush1.bf16.msra.mxu0 0
    %307 = vmatprep.subr.bf16.mxu0 0
    %308 = vmatpush1.bf16.msra.mxu0 0
    %309 = vmatprep.subr.bf16.mxu0 %v180
    %310 = vmatpush1.bf16.msra.mxu0 %v177
    %311 = vmatprep.subr.bf16.mxu0 0
    %312 = vmatpush2.bf16.msra.mxu0 0
    %313 = vmatprep.subr.bf16.mxu0 0
    %314 = vmatpush2.bf16.msra.mxu0 0
    %315 = vmatprep.subr.bf16.mxu0 0
    %316 = vmatpush2.bf16.msra.mxu0 0
    %317 = vmatprep.subr.bf16.mxu0 0
    %318 = vmatpush2.bf16.msra.mxu0 0
    %319 = vmatprep.subr.bf16.mxu0 0
    %320 = vmatpush2.bf16.msra.mxu0 0
    %321 = vmatprep.subr.bf16.mxu0 0
    %322 = vmatpush2.bf16.msra.mxu0 0
    %323 = vmatprep.subr.bf16.mxu0 0
    %324 = vmatpush2.bf16.msra.mxu0 0
    %325 = vmatprep.subr.bf16.mxu0 0
    %326 = vmatpush2.bf16.msra.mxu0 0
    %327 = vmatprep.mubr.bf16.mxu0 0
    %328 = vmatmul.mubr.bf16.gmra.mxu0 %v146
    %v329 = vpop.f32.mrf.mxu0
    %v330 = vadd.f32 %v77, %v329
    %v331 = vpop.f32.mrf.mxu0
    %v332 = vadd.f32 %v81, %v331
    %v333 = vpop.f32.mrf.mxu0
    %v334 = vadd.f32 %v77, %v333
    %v335 = vpop.f32.mrf.mxu0
    %v336 = vadd.f32 %v81, %v335
    %337 = vmatprep.mubr.bf16.mxu0 0
    %338 = vmatmul.mubr.bf16.gmra.mxu0 %v149
    %v339 = vpop.f32.mrf.mxu0
    %v340 = vadd.f32 %v77, %v339
    %v341 = vpop.f32.mrf.mxu0
    %v342 = vadd.f32 %v81, %v341
    %v343 = vpop.f32.mrf.mxu0
    %v344 = vadd.f32 %v77, %v343
    %v345 = vpop.f32.mrf.mxu0
    %v346 = vadd.f32 %v81, %v345
    %347 = vmatprep.mubr.bf16.mxu0 0
    %348 = vmatmul.mubr.bf16.gmra.mxu0 %v152
    %v349 = vpop.f32.mrf.mxu0
    %v350 = vadd.f32 %v77, %v349
    %v351 = vpop.f32.mrf.mxu0
    %v352 = vadd.f32 %v81, %v351
    %v353 = vpop.f32.mrf.mxu0
    %v354 = vadd.f32 %v77, %v353
    %v355 = vpop.f32.mrf.mxu0
    %v356 = vadd.f32 %v81, %v355
    %357 = vmatprep.mubr.bf16.mxu0 0
    %358 = vmatmul.mubr.bf16.gmra.mxu0 %v155
    %v359 = vpop.f32.mrf.mxu0
    %v360 = vadd.f32 %v77, %v359
    %v361 = vpop.f32.mrf.mxu0
    %v362 = vadd.f32 %v81, %v361
    %v363 = vpop.f32.mrf.mxu0
    %v364 = vadd.f32 %v77, %v363
    %v365 = vpop.f32.mrf.mxu0
    %v366 = vadd.f32 %v81, %v365
    %367 = vmatprep.mubr.bf16.mxu0 0
    %368 = vmatmul.mubr.bf16.gmra.mxu0 %v158
    %v369 = vpop.f32.mrf.mxu0
    %v370 = vadd.f32 %v77, %v369
    %v371 = vpop.f32.mrf.mxu0
    %v372 = vadd.f32 %v81, %v371
    %v373 = vpop.f32.mrf.mxu0
    %v374 = vadd.f32 %v77, %v373
    %v375 = vpop.f32.mrf.mxu0
    %v376 = vadd.f32 %v81, %v375
    %377 = vmatprep.mubr.bf16.mxu0 0
    %378 = vmatmul.mubr.bf16.gmra.mxu0 %v161
    %v379 = vpop.f32.mrf.mxu0
    %v380 = vadd.f32 %v77, %v379
    %v381 = vpop.f32.mrf.mxu0
    %v382 = vadd.f32 %v81, %v381
    %v383 = vpop.f32.mrf.mxu0
    %v384 = vadd.f32 %v77, %v383
    %v385 = vpop.f32.mrf.mxu0
    %v386 = vadd.f32 %v81, %v385
    %387 = vmatprep.mubr.bf16.mxu0 0
    %388 = vmatmul.mubr.bf16.gmra.mxu0 %v164
    %v389 = vpop.f32.mrf.mxu0
    %v390 = vadd.f32 %v77, %v389
    %v391 = vpop.f32.mrf.mxu0
    %v392 = vadd.f32 %v81, %v391
    %v393 = vpop.f32.mrf.mxu0
    %v394 = vadd.f32 %v77, %v393
    %v395 = vpop.f32.mrf.mxu0
    %v396 = vadd.f32 %v81, %v395
    %397 = vmatprep.mubr.bf16.mxu0 0
    %398 = vmatmul.mubr.bf16.gmra.mxu0 %v167
    %v399 = vpop.f32.mrf.mxu0
    %v400 = vadd.f32 %v77, %v399
    %v401 = vpop.f32.mrf.mxu0
    %v402 = vadd.f32 %v81, %v401
    %v403 = vpop.f32.mrf.mxu0
    %v404 = vadd.f32 %v77, %v403
    %v405 = vpop.f32.mrf.mxu0
    %v406 = vadd.f32 %v81, %v405
    %407 = vdwg.mxu0
    %408 = vst [vmem:[#allocation4] sm:$0xff] %v217
    %409 = vst [vmem:[#allocation4 + $0x8] sm:$0xff] %v219
    %410 = vst [vmem:[#allocation4 + $0x10] sm:$0xff] %v330
    %411 = vst [vmem:[#allocation4 + $0x18] sm:$0xff] %v332
    %412 = vst [vmem:[#allocation4 + $0x20] sm:$0xff] %v221
    %413 = vst [vmem:[#allocation4 + $0x28] sm:$0xff] %v223
    %414 = vst [vmem:[#allocation4 + $0x30] sm:$0xff] %v334
    %415 = vst [vmem:[#allocation4 + $0x38] sm:$0xff] %v336
    %416 = vst [vmem:[#allocation4 + $0x40] sm:$0xff] %v227
    %417 = vst [vmem:[#allocation4 + $0x48] sm:$0xff] %v229
    %418 = vst [vmem:[#allocation4 + $0x50] sm:$0xff] %v340
    %419 = vst [vmem:[#allocation4 + $0x58] sm:$0xff] %v342
    %420 = vst [vmem:[#allocation4 + $0x60] sm:$0xff] %v231
    %421 = vst [vmem:[#allocation4 + $0x68] sm:$0xff] %v233
    %422 = vst [vmem:[#allocation4 + $0x70] sm:$0xff] %v344
    %423 = vst [vmem:[#allocation4 + $0x78] sm:$0xff] %v346
    %424 = vst [vmem:[#allocation4 + $0x80] sm:$0xff] %v237
    %425 = vst [vmem:[#allocation4 + $0x88] sm:$0xff] %v239
    %426 = vst [vmem:[#allocation4 + $0x90] sm:$0xff] %v350
    %427 = vst [vmem:[#allocation4 + $0x98] sm:$0xff] %v352
    %428 = vst [vmem:[#allocation4 + $0xa0] sm:$0xff] %v241
    %429 = vst [vmem:[#allocation4 + $0xa8] sm:$0xff] %v243
    %430 = vst [vmem:[#allocation4 + $0xb0] sm:$0xff] %v354
    %431 = vst [vmem:[#allocation4 + $0xb8] sm:$0xff] %v356
    %432 = vst [vmem:[#allocation4 + $0xc0] sm:$0xff] %v247
    %433 = vst [vmem:[#allocation4 + $0xc8] sm:$0xff] %v249
    %434 = vst [vmem:[#allocation4 + $0xd0] sm:$0xff] %v360
    %435 = vst [vmem:[#allocation4 + $0xd8] sm:$0xff] %v362
    %436 = vst [vmem:[#allocation4 + $0xe0] sm:$0xff] %v251
    %437 = vst [vmem:[#allocation4 + $0xe8] sm:$0xff] %v253
    %438 = vst [vmem:[#allocation4 + $0xf0] sm:$0xff] %v364
    %439 = vst [vmem:[#allocation4 + $0xf8] sm:$0xff] %v366
    %440 = vst [vmem:[#allocation4 + $0x100] sm:$0xff] %v257
    %441 = vst [vmem:[#allocation4 + $0x108] sm:$0xff] %v259
    %442 = vst [vmem:[#allocation4 + $0x110] sm:$0xff] %v370
    %443 = vst [vmem:[#allocation4 + $0x118] sm:$0xff] %v372
    %444 = vst [vmem:[#allocation4 + $0x120] sm:$0xff] %v261
    %445 = vst [vmem:[#allocation4 + $0x128] sm:$0xff] %v263
    %446 = vst [vmem:[#allocation4 + $0x130] sm:$0xff] %v374
    %447 = vst [vmem:[#allocation4 + $0x138] sm:$0xff] %v376
    %448 = vst [vmem:[#allocation4 + $0x140] sm:$0xff] %v267
    %449 = vst [vmem:[#allocation4 + $0x148] sm:$0xff] %v269
    %450 = vst [vmem:[#allocation4 + $0x150] sm:$0xff] %v380
    %451 = vst [vmem:[#allocation4 + $0x158] sm:$0xff] %v382
    %452 = vst [vmem:[#allocation4 + $0x160] sm:$0xff] %v271
    %453 = vst [vmem:[#allocation4 + $0x168] sm:$0xff] %v273
    %454 = vst [vmem:[#allocation4 + $0x170] sm:$0xff] %v384
    %455 = vst [vmem:[#allocation4 + $0x178] sm:$0xff] %v386
    %456 = vst [vmem:[#allocation4 + $0x180] sm:$0xff] %v277
    %457 = vst [vmem:[#allocation4 + $0x188] sm:$0xff] %v279
    %458 = vst [vmem:[#allocation4 + $0x190] sm:$0xff] %v390
    %459 = vst [vmem:[#allocation4 + $0x198] sm:$0xff] %v392
    %460 = vst [vmem:[#allocation4 + $0x1a0] sm:$0xff] %v281
    %461 = vst [vmem:[#allocation4 + $0x1a8] sm:$0xff] %v283
    %462 = vst [vmem:[#allocation4 + $0x1b0] sm:$0xff] %v394
    %463 = vst [vmem:[#allocation4 + $0x1b8] sm:$0xff] %v396
    %464 = vst [vmem:[#allocation4 + $0x1c0] sm:$0xff] %v287
    %465 = vst [vmem:[#allocation4 + $0x1c8] sm:$0xff] %v289
    %466 = vst [vmem:[#allocation4 + $0x1d0] sm:$0xff] %v400
    %467 = vst [vmem:[#allocation4 + $0x1d8] sm:$0xff] %v402
    %468 = vst [vmem:[#allocation4 + $0x1e0] sm:$0xff] %v291
    %469 = vst [vmem:[#allocation4 + $0x1e8] sm:$0xff] %v293
    %470 = vst [vmem:[#allocation4 + $0x1f0] sm:$0xff] %v404
    %471 = vst [vmem:[#allocation4 + $0x1f8] sm:$0xff] %v406
    %v472 = vld [vmem:[#allocation5] sm:$0xff]
    %v473 = vld [vmem:[#allocation5 + $0x8] sm:$0xff]
    %v474 = vld [vmem:[#allocation5 + $0x10] sm:$0xff]
    %v475 = vld [vmem:[#allocation5 + $0x18] sm:$0xff]
    %v476 = vld [vmem:[#allocation5 + $0x20] sm:$0xff]
    %v477 = vld [vmem:[#allocation5 + $0x28] sm:$0xff]
    %v478 = vld [vmem:[#allocation5 + $0x30] sm:$0xff]
    %v479 = vld [vmem:[#allocation5 + $0x38] sm:$0xff]
    %v480 = vld [vmem:[#allocation5 + $0x40] sm:$0xff]
    %v481 = vld [vmem:[#allocation5 + $0x48] sm:$0xff]
    %v482 = vld [vmem:[#allocation5 + $0x50] sm:$0xff]
    %v483 = vld [vmem:[#allocation5 + $0x58] sm:$0xff]
    %v484 = vld [vmem:[#allocation5 + $0x60] sm:$0xff]
    %v485 = vld [vmem:[#allocation5 + $0x68] sm:$0xff]
    %v486 = vld [vmem:[#allocation5 + $0x70] sm:$0xff]
    %v487 = vld [vmem:[#allocation5 + $0x78] sm:$0xff]
    %v488 = vld [vmem:[#allocation5 + $0x80] sm:$0xff]
    %v489 = vld [vmem:[#allocation5 + $0x88] sm:$0xff]
    %v490 = vld [vmem:[#allocation5 + $0x90] sm:$0xff]
    %v491 = vld [vmem:[#allocation5 + $0x98] sm:$0xff]
    %v492 = vld [vmem:[#allocation5 + $0xa0] sm:$0xff]
    %v493 = vld [vmem:[#allocation5 + $0xa8] sm:$0xff]
    %v494 = vld [vmem:[#allocation5 + $0xb0] sm:$0xff]
    %v495 = vld [vmem:[#allocation5 + $0xb8] sm:$0xff]
    %v496 = vld [vmem:[#allocation5 + $0xc0] sm:$0xff]
    %v497 = vld [vmem:[#allocation5 + $0xc8] sm:$0xff]
    %v498 = vld [vmem:[#allocation5 + $0xd0] sm:$0xff]
    %v499 = vld [vmem:[#allocation5 + $0xd8] sm:$0xff]
    %v500 = vld [vmem:[#allocation5 + $0xe0] sm:$0xff]
    %v501 = vld [vmem:[#allocation5 + $0xe8] sm:$0xff]
    %v502 = vld [vmem:[#allocation5 + $0xf0] sm:$0xff]
    %v503 = vld [vmem:[#allocation5 + $0xf8] sm:$0xff]
    %v504 = vld [vmem:[#allocation2] sm:$0xff]
    %v505 = vld [vmem:[#allocation2 + $0x8] sm:$0xff]
    %v506 = vld [vmem:[#allocation3] sm:$0xff]
    %v507 = vld [vmem:[#allocation3 + $0x8] sm:$0xff]
    %v508 = vld [vmem:[#allocation4] sm:$0xff]
    %v509 = vld [vmem:[#allocation4 + $0x8] sm:$0xff]
    %v510 = vld [vmem:[#allocation4 + $0x10] sm:$0xff]
    %v511 = vld [vmem:[#allocation4 + $0x18] sm:$0xff]
    %v512 = vld [vmem:[#allocation4 + $0x20] sm:$0xff]
    %v513 = vld [vmem:[#allocation4 + $0x28] sm:$0xff]
    %v514 = vld [vmem:[#allocation4 + $0x30] sm:$0xff]
    %v515 = vld [vmem:[#allocation4 + $0x38] sm:$0xff]
    %v516 = vpack.c.bf16 %v505, %v504
    %v549 = vunpack.c.l.b16 %v472
    %v550 = vunpack.c.h.b16 %v472
    %v551 = vunpack.c.l.b16 %v473
    %v552 = vunpack.c.h.b16 %v473
    %v553 = vunpack.c.l.b16 %v474
    %v554 = vunpack.c.h.b16 %v474
    %v555 = vunpack.c.l.b16 %v475
    %v556 = vunpack.c.h.b16 %v475
    %v557 = vunpack.c.l.b16 %v476
    %v558 = vunpack.c.h.b16 %v476
    %v559 = vunpack.c.l.b16 %v477
    %v560 = vunpack.c.h.b16 %v477
    %v561 = vunpack.c.l.b16 %v478
    %v562 = vunpack.c.h.b16 %v478
    %v563 = vunpack.c.l.b16 %v479
    %v564 = vunpack.c.h.b16 %v479
    %v565 = vunpack.c.l.b16 %v480
    %v566 = vunpack.c.h.b16 %v480
    %v567 = vunpack.c.l.b16 %v481
    %v568 = vunpack.c.h.b16 %v481
    %v569 = vunpack.c.l.b16 %v482
    %v570 = vunpack.c.h.b16 %v482
    %v571 = vunpack.c.l.b16 %v483
    %v572 = vunpack.c.h.b16 %v483
    %v573 = vunpack.c.l.b16 %v484
    %v574 = vunpack.c.h.b16 %v484
    %v575 = vunpack.c.l.b16 %v485
    %v576 = vunpack.c.h.b16 %v485
    %v577 = vunpack.c.l.b16 %v486
    %v578 = vunpack.c.h.b16 %v486
    %v579 = vunpack.c.l.b16 %v487
    %v580 = vunpack.c.h.b16 %v487
    %v581 = vunpack.c.l.b16 %v488
    %v582 = vunpack.c.h.b16 %v488
    %v583 = vunpack.c.l.b16 %v489
    %v584 = vunpack.c.h.b16 %v489
    %v585 = vunpack.c.l.b16 %v490
    %v586 = vunpack.c.h.b16 %v490
    %v587 = vunpack.c.l.b16 %v491
    %v588 = vunpack.c.h.b16 %v491
    %v589 = vunpack.c.l.b16 %v492
    %v590 = vunpack.c.h.b16 %v492
    %v591 = vunpack.c.l.b16 %v493
    %v592 = vunpack.c.h.b16 %v493
    %v593 = vunpack.c.l.b16 %v494
    %v594 = vunpack.c.h.b16 %v494
    %v595 = vunpack.c.l.b16 %v495
    %v596 = vunpack.c.h.b16 %v495
    %v597 = vunpack.c.l.b16 %v496
    %v598 = vunpack.c.h.b16 %v496
    %v599 = vunpack.c.l.b16 %v497
    %v600 = vunpack.c.h.b16 %v497
    %v601 = vunpack.c.l.b16 %v498
    %v602 = vunpack.c.h.b16 %v498
    %v603 = vunpack.c.l.b16 %v499
    %v604 = vunpack.c.h.b16 %v499
    %v605 = vunpack.c.l.b16 %v500
    %v606 = vunpack.c.h.b16 %v500
    %v607 = vunpack.c.l.b16 %v501
    %v608 = vunpack.c.h.b16 %v501
    %v609 = vunpack.c.l.b16 %v502
    %v610 = vunpack.c.h.b16 %v502
    %v611 = vunpack.c.l.b16 %v503
    %v612 = vunpack.c.h.b16 %v503
    %v613 = vpack.c.b16 %v553, %v549
    %v614 = vpack.c.b16 %v554, %v550
    %v615 = vpack.c.b16 %v555, %v551
    %v616 = vpack.c.b16 %v556, %v552
    %v617 = vpack.c.b16 %v561, %v557
    %v618 = vpack.c.b16 %v562, %v558
    %v619 = vpack.c.b16 %v563, %v559
    %v620 = vpack.c.b16 %v564, %v560
    %v621 = vpack.c.b16 %v569, %v565
    %v622 = vpack.c.b16 %v570, %v566
    %v623 = vpack.c.b16 %v571, %v567
    %v624 = vpack.c.b16 %v572, %v568
    %v625 = vpack.c.b16 %v577, %v573
    %v626 = vpack.c.b16 %v578, %v574
    %v627 = vpack.c.b16 %v579, %v575
    %v628 = vpack.c.b16 %v580, %v576
    %v629 = vpack.c.b16 %v585, %v581
    %v630 = vpack.c.b16 %v586, %v582
    %v631 = vpack.c.b16 %v587, %v583
    %v632 = vpack.c.b16 %v588, %v584
    %v633 = vpack.c.b16 %v593, %v589
    %v634 = vpack.c.b16 %v594, %v590
    %v635 = vpack.c.b16 %v595, %v591
    %v636 = vpack.c.b16 %v596, %v592
    %v637 = vpack.c.b16 %v601, %v597
    %v638 = vpack.c.b16 %v602, %v598
    %v639 = vpack.c.b16 %v603, %v599
    %v640 = vpack.c.b16 %v604, %v600
    %v641 = vpack.c.b16 %v609, %v605
    %v642 = vpack.c.b16 %v610, %v606
    %v643 = vpack.c.b16 %v611, %v607
    %v644 = vpack.c.b16 %v612, %v608
    %677 = vmatprep.subr.bf16.mxu0 %v642
    %678 = vmatpush1.bf16.msra.mxu0 %v641
    %679 = vmatprep.subr.bf16.mxu0 %v638
    %680 = vmatpush1.bf16.msra.mxu0 %v637
    %681 = vmatprep.subr.bf16.mxu0 %v634
    %682 = vmatpush1.bf16.msra.mxu0 %v633
    %683 = vmatprep.subr.bf16.mxu0 %v630
    %684 = vmatpush1.bf16.msra.mxu0 %v629
    %685 = vmatprep.subr.bf16.mxu0 %v626
    %686 = vmatpush1.bf16.msra.mxu0 %v625
    %687 = vmatprep.subr.bf16.mxu0 %v622
    %688 = vmatpush1.bf16.msra.mxu0 %v621
    %689 = vmatprep.subr.bf16.mxu0 %v618
    %690 = vmatpush1.bf16.msra.mxu0 %v617
    %691 = vmatprep.subr.bf16.mxu0 %v614
    %692 = vmatpush1.bf16.msra.mxu0 %v613
    %693 = vmatprep.subr.bf16.mxu0 0
    %694 = vmatpush2.bf16.msra.mxu0 0
    %695 = vmatprep.subr.bf16.mxu0 0
    %696 = vmatpush2.bf16.msra.mxu0 0
    %697 = vmatprep.subr.bf16.mxu0 0
    %698 = vmatpush2.bf16.msra.mxu0 0
    %699 = vmatprep.subr.bf16.mxu0 0
    %700 = vmatpush2.bf16.msra.mxu0 0
    %701 = vmatprep.subr.bf16.mxu0 0
    %702 = vmatpush2.bf16.msra.mxu0 0
    %703 = vmatprep.subr.bf16.mxu0 0
    %704 = vmatpush2.bf16.msra.mxu0 0
    %705 = vmatprep.subr.bf16.mxu0 0
    %706 = vmatpush2.bf16.msra.mxu0 0
    %707 = vmatprep.subr.bf16.mxu0 0
    %708 = vmatpush2.bf16.msra.mxu0 0
    %709 = vmatprep.mubr.bf16.mxu0 0
    %710 = vmatmul.mubr.bf16.gmra.mxu0 %v516
    %v711 = vpop.f32.mrf.mxu0
    %v712 = vadd.f32 0.0, %v711
    %v713 = vpop.f32.mrf.mxu0
    %v714 = vadd.f32 0.0, %v713
    %v715 = vpop.f32.mrf.mxu0
    %v716 = vadd.f32 0.0, %v715
    %v717 = vpop.f32.mrf.mxu0
    %v718 = vadd.f32 0.0, %v717
    %719 = vdwg.mxu0
    %720 = vmatprep.subr.bf16.mxu0 %v644
    %721 = vmatpush1.bf16.msra.mxu0 %v643
    %722 = vmatprep.subr.bf16.mxu0 %v640
    %723 = vmatpush1.bf16.msra.mxu0 %v639
    %724 = vmatprep.subr.bf16.mxu0 %v636
    %725 = vmatpush1.bf16.msra.mxu0 %v635
    %726 = vmatprep.subr.bf16.mxu0 %v632
    %727 = vmatpush1.bf16.msra.mxu0 %v631
    %728 = vmatprep.subr.bf16.mxu0 %v628
    %729 = vmatpush1.bf16.msra.mxu0 %v627
    %730 = vmatprep.subr.bf16.mxu0 %v624
    %731 = vmatpush1.bf16.msra.mxu0 %v623
    %732 = vmatprep.subr.bf16.mxu0 %v620
    %733 = vmatpush1.bf16.msra.mxu0 %v619
    %734 = vmatprep.subr.bf16.mxu0 %v616
    %735 = vmatpush1.bf16.msra.mxu0 %v615
    %736 = vmatprep.subr.bf16.mxu0 0
    %737 = vmatpush2.bf16.msra.mxu0 0
    %738 = vmatprep.subr.bf16.mxu0 0
    %739 = vmatpush2.bf16.msra.mxu0 0
    %740 = vmatprep.subr.bf16.mxu0 0
    %741 = vmatpush2.bf16.msra.mxu0 0
    %742 = vmatprep.subr.bf16.mxu0 0
    %743 = vmatpush2.bf16.msra.mxu0 0
    %744 = vmatprep.subr.bf16.mxu0 0
    %745 = vmatpush2.bf16.msra.mxu0 0
    %746 = vmatprep.subr.bf16.mxu0 0
    %747 = vmatpush2.bf16.msra.mxu0 0
    %748 = vmatprep.subr.bf16.mxu0 0
    %749 = vmatpush2.bf16.msra.mxu0 0
    %750 = vmatprep.subr.bf16.mxu0 0
    %751 = vmatpush2.bf16.msra.mxu0 0
    %752 = vmatprep.mubr.bf16.mxu0 0
    %753 = vmatmul.mubr.bf16.gmra.mxu0 %v516
    %v754 = vpop.f32.mrf.mxu0
    %v755 = vadd.f32 0.0, %v754
    %v756 = vpop.f32.mrf.mxu0
    %v757 = vadd.f32 0.0, %v756
    %v758 = vpop.f32.mrf.mxu0
    %v759 = vadd.f32 0.0, %v758
    %v760 = vpop.f32.mrf.mxu0
    %v761 = vadd.f32 0.0, %v760
    %762 = vdwg.mxu0
    %v763 = vadd.f32 %v508, %v712
    %v764 = vadd.f32 %v509, %v714
    %v765 = vadd.f32 %v510, %v755
    %v766 = vadd.f32 %v511, %v757
    %v767 = vadd.f32 %v512, %v716
    %v768 = vadd.f32 %v513, %v718
    %v769 = vadd.f32 %v514, %v759
    %v770 = vadd.f32 %v515, %v761
    %v771 = vmul.f32 %v763, 0.5
    %v772 = vmul.f32 %v767, 0.5
    %v773 = vtanh.pop %v771
    %v774 = vtanh.pop %v772
    %v775 = vmul.f32 %v773, 0.5
    %v776 = vmul.f32 %v774, 0.5
    %v777 = vadd.f32 %v775, 0.5
    %v778 = vadd.f32 %v776, 0.5
    %v779 = vmul.f32 %v764, 0.5
    %v780 = vmul.f32 %v768, 0.5
    %v781 = vtanh.pop %v779
    %v782 = vtanh.pop %v780
    %v783 = vmul.f32 %v781, 0.5
    %v784 = vmul.f32 %v782, 0.5
    %v785 = vadd.f32 %v783, 0.5
    %v786 = vadd.f32 %v784, 0.5
    %v787 = vtanh.pop %v765
    %v788 = vtanh.pop %v769
    %v789 = vmul.f32 %v766, 0.5
    %v790 = vmul.f32 %v770, 0.5
    %v791 = vtanh.pop %v789
    %v792 = vtanh.pop %v790
    %v793 = vmul.f32 %v791, 0.5
    %v794 = vmul.f32 %v792, 0.5
    %v795 = vadd.f32 %v793, 0.5
    %v796 = vadd.f32 %v794, 0.5
    %v797 = vmul.f32 %v785, %v506
    %v798 = vmul.f32 %v786, %v507
    %v799 = vmul.f32 %v777, %v787
    %v800 = vmul.f32 %v778, %v788
    %v801 = vadd.f32 %v797, %v799
    %v802 = vadd.f32 %v798, %v800
    %v803 = vtanh.pop %v801
    %v804 = vtanh.pop %v802
    %v805 = vmul.f32 %v795, %v803
    %v806 = vmul.f32 %v796, %v804
    %s807 = scalar_lea.vmem [#allocation4], 64
    %v808 = vld [vmem:[%s807] sm:$0xff]
    %v809 = vld [vmem:[%s807 + $0x8] sm:$0xff]
    %v810 = vld [vmem:[%s807 + $0x10] sm:$0xff]
    %v811 = vld [vmem:[%s807 + $0x18] sm:$0xff]
    %v812 = vld [vmem:[%s807 + $0x20] sm:$0xff]
    %v813 = vld [vmem:[%s807 + $0x28] sm:$0xff]
    %v814 = vld [vmem:[%s807 + $0x30] sm:$0xff]
    %v815 = vld [vmem:[%s807 + $0x38] sm:$0xff]
    %v816 = vpack.c.bf16 %v806, %v805
    %817 = vmatprep.subr.bf16.mxu0 %v642
    %818 = vmatpush1.bf16.msra.mxu0 %v641
    %819 = vmatprep.subr.bf16.mxu0 %v638
    %820 = vmatpush1.bf16.msra.mxu0 %v637
    %821 = vmatprep.subr.bf16.mxu0 %v634
    %822 = vmatpush1.bf16.msra.mxu0 %v633
    %823 = vmatprep.subr.bf16.mxu0 %v630
    %824 = vmatpush1.bf16.msra.mxu0 %v629
    %825 = vmatprep.subr.bf16.mxu0 %v626
    %826 = vmatpush1.bf16.msra.mxu0 %v625
    %827 = vmatprep.subr.bf16.mxu0 %v622
    %828 = vmatpush1.bf16.msra.mxu0 %v621
    %829 = vmatprep.subr.bf16.mxu0 %v618
    %830 = vmatpush1.bf16.msra.mxu0 %v617
    %831 = vmatprep.subr.bf16.mxu0 %v614
    %832 = vmatpush1.bf16.msra.mxu0 %v613
    %833 = vmatprep.subr.bf16.mxu0 0
    %834 = vmatpush2.bf16.msra.mxu0 0
    %835 = vmatprep.subr.bf16.mxu0 0
    %836 = vmatpush2.bf16.msra.mxu0 0
    %837 = vmatprep.subr.bf16.mxu0 0
    %838 = vmatpush2.bf16.msra.mxu0 0
    %839 = vmatprep.subr.bf16.mxu0 0
    %840 = vmatpush2.bf16.msra.mxu0 0
    %841 = vmatprep.subr.bf16.mxu0 0
    %842 = vmatpush2.bf16.msra.mxu0 0
    %843 = vmatprep.subr.bf16.mxu0 0
    %844 = vmatpush2.bf16.msra.mxu0 0
    %845 = vmatprep.subr.bf16.mxu0 0
    %846 = vmatpush2.bf16.msra.mxu0 0
    %847 = vmatprep.subr.bf16.mxu0 0
    %848 = vmatpush2.bf16.msra.mxu0 0
    %849 = vmatprep.mubr.bf16.mxu0 0
    %850 = vmatmul.mubr.bf16.gmra.mxu0 %v816
    %v851 = vpop.f32.mrf.mxu0
    %v852 = vadd.f32 0.0, %v851
    %v853 = vpop.f32.mrf.mxu0
    %v854 = vadd.f32 0.0, %v853
    %v855 = vpop.f32.mrf.mxu0
    %v856 = vadd.f32 0.0, %v855
    %v857 = vpop.f32.mrf.mxu0
    %v858 = vadd.f32 0.0, %v857
    %859 = vdwg.mxu0
    %860 = vmatprep.subr.bf16.mxu0 %v644
    %861 = vmatpush1.bf16.msra.mxu0 %v643
    %862 = vmatprep.subr.bf16.mxu0 %v640
    %863 = vmatpush1.bf16.msra.mxu0 %v639
    %864 = vmatprep.subr.bf16.mxu0 %v636
    %865 = vmatpush1.bf16.msra.mxu0 %v635
    %866 = vmatprep.subr.bf16.mxu0 %v632
    %867 = vmatpush1.bf16.msra.mxu0 %v631
    %868 = vmatprep.subr.bf16.mxu0 %v628
    %869 = vmatpush1.bf16.msra.mxu0 %v627
    %870 = vmatprep.subr.bf16.mxu0 %v624
    %871 = vmatpush1.bf16.msra.mxu0 %v623
    %872 = vmatprep.subr.bf16.mxu0 %v620
    %873 = vmatpush1.bf16.msra.mxu0 %v619
    %874 = vmatprep.subr.bf16.mxu0 %v616
    %875 = vmatpush1.bf16.msra.mxu0 %v615
    %876 = vmatprep.subr.bf16.mxu0 0
    %877 = vmatpush2.bf16.msra.mxu0 0
    %878 = vmatprep.subr.bf16.mxu0 0
    %879 = vmatpush2.bf16.msra.mxu0 0
    %880 = vmatprep.subr.bf16.mxu0 0
    %881 = vmatpush2.bf16.msra.mxu0 0
    %882 = vmatprep.subr.bf16.mxu0 0
    %883 = vmatpush2.bf16.msra.mxu0 0
    %884 = vmatprep.subr.bf16.mxu0 0
    %885 = vmatpush2.bf16.msra.mxu0 0
    %886 = vmatprep.subr.bf16.mxu0 0
    %887 = vmatpush2.bf16.msra.mxu0 0
    %888 = vmatprep.subr.bf16.mxu0 0
    %889 = vmatpush2.bf16.msra.mxu0 0
    %890 = vmatprep.subr.bf16.mxu0 0
    %891 = vmatpush2.bf16.msra.mxu0 0
    %892 = vmatprep.mubr.bf16.mxu0 0
    %893 = vmatmul.mubr.bf16.gmra.mxu0 %v816
    %v894 = vpop.f32.mrf.mxu0
    %v895 = vadd.f32 0.0, %v894
    %v896 = vpop.f32.mrf.mxu0
    %v897 = vadd.f32 0.0, %v896
    %v898 = vpop.f32.mrf.mxu0
    %v899 = vadd.f32 0.0, %v898
    %v900 = vpop.f32.mrf.mxu0
    %v901 = vadd.f32 0.0, %v900
    %902 = vdwg.mxu0
    %v903 = vadd.f32 %v808, %v852
    %v904 = vadd.f32 %v809, %v854
    %v905 = vadd.f32 %v810, %v895
    %v906 = vadd.f32 %v811, %v897
    %v907 = vadd.f32 %v812, %v856
    %v908 = vadd.f32 %v813, %v858
    %v909 = vadd.f32 %v814, %v899
    %v910 = vadd.f32 %v815, %v901
    %v911 = vmul.f32 %v903, 0.5
    %v912 = vmul.f32 %v907, 0.5
    %v913 = vtanh.pop %v911
    %v914 = vtanh.pop %v912
    %v915 = vmul.f32 %v913, 0.5
    %v916 = vmul.f32 %v914, 0.5
    %v917 = vadd.f32 %v915, 0.5
    %v918 = vadd.f32 %v916, 0.5
    %v919 = vmul.f32 %v904, 0.5
    %v920 = vmul.f32 %v908, 0.5
    %v921 = vtanh.pop %v919
    %v922 = vtanh.pop %v920
    %v923 = vmul.f32 %v921, 0.5
    %v924 = vmul.f32 %v922, 0.5
    %v925 = vadd.f32 %v923, 0.5
    %v926 = vadd.f32 %v924, 0.5
    %v927 = vtanh.pop %v905
    %v928 = vtanh.pop %v909
    %v929 = vmul.f32 %v906, 0.5
    %v930 = vmul.f32 %v910, 0.5
    %v931 = vtanh.pop %v929
    %v932 = vtanh.pop %v930
    %v933 = vmul.f32 %v931, 0.5
    %v934 = vmul.f32 %v932, 0.5
    %v935 = vadd.f32 %v933, 0.5
    %v936 = vadd.f32 %v934, 0.5
    %v937 = vmul.f32 %v925, %v801
    %v938 = vmul.f32 %v926, %v802
    %v939 = vmul.f32 %v917, %v927
    %v940 = vmul.f32 %v918, %v928
    %v941 = vadd.f32 %v937, %v939
    %v942 = vadd.f32 %v938, %v940
    %v943 = vtanh.pop %v941
    %v944 = vtanh.pop %v942
    %v945 = vmul.f32 %v935, %v943
    %v946 = vmul.f32 %v936, %v944
    %s947 = scalar_lea.vmem [#allocation4], 128
    %v948 = vld [vmem:[%s947] sm:$0xff]
    %v949 = vld [vmem:[%s947 + $0x8] sm:$0xff]
    %v950 = vld [vmem:[%s947 + $0x10] sm:$0xff]
    %v951 = vld [vmem:[%s947 + $0x18] sm:$0xff]
    %v952 = vld [vmem:[%s947 + $0x20] sm:$0xff]
    %v953 = vld [vmem:[%s947 + $0x28] sm:$0xff]
    %v954 = vld [vmem:[%s947 + $0x30] sm:$0xff]
    %v955 = vld [vmem:[%s947 + $0x38] sm:$0xff]
    %v956 = vpack.c.bf16 %v946, %v945
    %957 = vmatprep.subr.bf16.mxu0 %v642
    %958 = vmatpush1.bf16.msra.mxu0 %v641
    %959 = vmatprep.subr.bf16.mxu0 %v638
    %960 = vmatpush1.bf16.msra.mxu0 %v637
    %961 = vmatprep.subr.bf16.mxu0 %v634
    %962 = vmatpush1.bf16.msra.mxu0 %v633
    %963 = vmatprep.subr.bf16.mxu0 %v630
    %964 = vmatpush1.bf16.msra.mxu0 %v629
    %965 = vmatprep.subr.bf16.mxu0 %v626
    %966 = vmatpush1.bf16.msra.mxu0 %v625
    %967 = vmatprep.subr.bf16.mxu0 %v622
    %968 = vmatpush1.bf16.msra.mxu0 %v621
    %969 = vmatprep.subr.bf16.mxu0 %v618
    %970 = vmatpush1.bf16.msra.mxu0 %v617
    %971 = vmatprep.subr.bf16.mxu0 %v614
    %972 = vmatpush1.bf16.msra.mxu0 %v613
    %973 = vmatprep.subr.bf16.mxu0 0
    %974 = vmatpush2.bf16.msra.mxu0 0
    %975 = vmatprep.subr.bf16.mxu0 0
    %976 = vmatpush2.bf16.msra.mxu0 0
    %977 = vmatprep.subr.bf16.mxu0 0
    %978 = vmatpush2.bf16.msra.mxu0 0
    %979 = vmatprep.subr.bf16.mxu0 0
    %980 = vmatpush2.bf16.msra.mxu0 0
    %981 = vmatprep.subr.bf16.mxu0 0
    %982 = vmatpush2.bf16.msra.mxu0 0
    %983 = vmatprep.subr.bf16.mxu0 0
    %984 = vmatpush2.bf16.msra.mxu0 0
    %985 = vmatprep.subr.bf16.mxu0 0
    %986 = vmatpush2.bf16.msra.mxu0 0
    %987 = vmatprep.subr.bf16.mxu0 0
    %988 = vmatpush2.bf16.msra.mxu0 0
    %989 = vmatprep.mubr.bf16.mxu0 0
    %990 = vmatmul.mubr.bf16.gmra.mxu0 %v956
    %v991 = vpop.f32.mrf.mxu0
    %v992 = vadd.f32 0.0, %v991
    %v993 = vpop.f32.mrf.mxu0
    %v994 = vadd.f32 0.0, %v993
    %v995 = vpop.f32.mrf.mxu0
    %v996 = vadd.f32 0.0, %v995
    %v997 = vpop.f32.mrf.mxu0
    %v998 = vadd.f32 0.0, %v997
    %999 = vdwg.mxu0
    %1000 = vmatprep.subr.bf16.mxu0 %v644
    %1001 = vmatpush1.bf16.msra.mxu0 %v643
    %1002 = vmatprep.subr.bf16.mxu0 %v640
    %1003 = vmatpush1.bf16.msra.mxu0 %v639
    %1004 = vmatprep.subr.bf16.mxu0 %v636
    %1005 = vmatpush1.bf16.msra.mxu0 %v635
    %1006 = vmatprep.subr.bf16.mxu0 %v632
    %1007 = vmatpush1.bf16.msra.mxu0 %v631
    %1008 = vmatprep.subr.bf16.mxu0 %v628
    %1009 = vmatpush1.bf16.msra.mxu0 %v627
    %1010 = vmatprep.subr.bf16.mxu0 %v624
    %1011 = vmatpush1.bf16.msra.mxu0 %v623
    %1012 = vmatprep.subr.bf16.mxu0 %v620
    %1013 = vmatpush1.bf16.msra.mxu0 %v619
    %1014 = vmatprep.subr.bf16.mxu0 %v616
    %1015 = vmatpush1.bf16.msra.mxu0 %v615
    %1016 = vmatprep.subr.bf16.mxu0 0
    %1017 = vmatpush2.bf16.msra.mxu0 0
    %1018 = vmatprep.subr.bf16.mxu0 0
    %1019 = vmatpush2.bf16.msra.mxu0 0
    %1020 = vmatprep.subr.bf16.mxu0 0
    %1021 = vmatpush2.bf16.msra.mxu0 0
    %1022 = vmatprep.subr.bf16.mxu0 0
    %1023 = vmatpush2.bf16.msra.mxu0 0
    %1024 = vmatprep.subr.bf16.mxu0 0
    %1025 = vmatpush2.bf16.msra.mxu0 0
    %1026 = vmatprep.subr.bf16.mxu0 0
    %1027 = vmatpush2.bf16.msra.mxu0 0
    %1028 = vmatprep.subr.bf16.mxu0 0
    %1029 = vmatpush2.bf16.msra.mxu0 0
    %1030 = vmatprep.subr.bf16.mxu0 0
    %1031 = vmatpush2.bf16.msra.mxu0 0
    %1032 = vmatprep.mubr.bf16.mxu0 0
    %1033 = vmatmul.mubr.bf16.gmra.mxu0 %v956
    %v1034 = vpop.f32.mrf.mxu0
    %v1035 = vadd.f32 0.0, %v1034
    %v1036 = vpop.f32.mrf.mxu0
    %v1037 = vadd.f32 0.0, %v1036
    %v1038 = vpop.f32.mrf.mxu0
    %v1039 = vadd.f32 0.0, %v1038
    %v1040 = vpop.f32.mrf.mxu0
    %v1041 = vadd.f32 0.0, %v1040
    %1042 = vdwg.mxu0
    %v1043 = vadd.f32 %v948, %v992
    %v1044 = vadd.f32 %v949, %v994
    %v1045 = vadd.f32 %v950, %v1035
    %v1046 = vadd.f32 %v951, %v1037
    %v1047 = vadd.f32 %v952, %v996
    %v1048 = vadd.f32 %v953, %v998
    %v1049 = vadd.f32 %v954, %v1039
    %v1050 = vadd.f32 %v955, %v1041
    %v1051 = vmul.f32 %v1043, 0.5
    %v1052 = vmul.f32 %v1047, 0.5
    %v1053 = vtanh.pop %v1051
    %v1054 = vtanh.pop %v1052
    %v1055 = vmul.f32 %v1053, 0.5
    %v1056 = vmul.f32 %v1054, 0.5
    %v1057 = vadd.f32 %v1055, 0.5
    %v1058 = vadd.f32 %v1056, 0.5
    %v1059 = vmul.f32 %v1044, 0.5
    %v1060 = vmul.f32 %v1048, 0.5
    %v1061 = vtanh.pop %v1059
    %v1062 = vtanh.pop %v1060
    %v1063 = vmul.f32 %v1061, 0.5
    %v1064 = vmul.f32 %v1062, 0.5
    %v1065 = vadd.f32 %v1063, 0.5
    %v1066 = vadd.f32 %v1064, 0.5
    %v1067 = vtanh.pop %v1045
    %v1068 = vtanh.pop %v1049
    %v1069 = vmul.f32 %v1046, 0.5
    %v1070 = vmul.f32 %v1050, 0.5
    %v1071 = vtanh.pop %v1069
    %v1072 = vtanh.pop %v1070
    %v1073 = vmul.f32 %v1071, 0.5
    %v1074 = vmul.f32 %v1072, 0.5
    %v1075 = vadd.f32 %v1073, 0.5
    %v1076 = vadd.f32 %v1074, 0.5
    %v1077 = vmul.f32 %v1065, %v941
    %v1078 = vmul.f32 %v1066, %v942
    %v1079 = vmul.f32 %v1057, %v1067
    %v1080 = vmul.f32 %v1058, %v1068
    %v1081 = vadd.f32 %v1077, %v1079
    %v1082 = vadd.f32 %v1078, %v1080
    %v1083 = vtanh.pop %v1081
    %v1084 = vtanh.pop %v1082
    %v1085 = vmul.f32 %v1075, %v1083
    %v1086 = vmul.f32 %v1076, %v1084
    %s1087 = scalar_lea.vmem [#allocation4], 192
    %v1088 = vld [vmem:[%s1087] sm:$0xff]
    %v1089 = vld [vmem:[%s1087 + $0x8] sm:$0xff]
    %v1090 = vld [vmem:[%s1087 + $0x10] sm:$0xff]
    %v1091 = vld [vmem:[%s1087 + $0x18] sm:$0xff]
    %v1092 = vld [vmem:[%s1087 + $0x20] sm:$0xff]
    %v1093 = vld [vmem:[%s1087 + $0x28] sm:$0xff]
    %v1094 = vld [vmem:[%s1087 + $0x30] sm:$0xff]
    %v1095 = vld [vmem:[%s1087 + $0x38] sm:$0xff]
    %v1096 = vpack.c.bf16 %v1086, %v1085
    %1097 = vmatprep.subr.bf16.mxu0 %v642
    %1098 = vmatpush1.bf16.msra.mxu0 %v641
    %1099 = vmatprep.subr.bf16.mxu0 %v638
    %1100 = vmatpush1.bf16.msra.mxu0 %v637
    %1101 = vmatprep.subr.bf16.mxu0 %v634
    %1102 = vmatpush1.bf16.msra.mxu0 %v633
    %1103 = vmatprep.subr.bf16.mxu0 %v630
    %1104 = vmatpush1.bf16.msra.mxu0 %v629
    %1105 = vmatprep.subr.bf16.mxu0 %v626
    %1106 = vmatpush1.bf16.msra.mxu0 %v625
    %1107 = vmatprep.subr.bf16.mxu0 %v622
    %1108 = vmatpush1.bf16.msra.mxu0 %v621
    %1109 = vmatprep.subr.bf16.mxu0 %v618
    %1110 = vmatpush1.bf16.msra.mxu0 %v617
    %1111 = vmatprep.subr.bf16.mxu0 %v614
    %1112 = vmatpush1.bf16.msra.mxu0 %v613
    %1113 = vmatprep.subr.bf16.mxu0 0
    %1114 = vmatpush2.bf16.msra.mxu0 0
    %1115 = vmatprep.subr.bf16.mxu0 0
    %1116 = vmatpush2.bf16.msra.mxu0 0
    %1117 = vmatprep.subr.bf16.mxu0 0
    %1118 = vmatpush2.bf16.msra.mxu0 0
    %1119 = vmatprep.subr.bf16.mxu0 0
    %1120 = vmatpush2.bf16.msra.mxu0 0
    %1121 = vmatprep.subr.bf16.mxu0 0
    %1122 = vmatpush2.bf16.msra.mxu0 0
    %1123 = vmatprep.subr.bf16.mxu0 0
    %1124 = vmatpush2.bf16.msra.mxu0 0
    %1125 = vmatprep.subr.bf16.mxu0 0
    %1126 = vmatpush2.bf16.msra.mxu0 0
    %1127 = vmatprep.subr.bf16.mxu0 0
    %1128 = vmatpush2.bf16.msra.mxu0 0
    %1129 = vmatprep.mubr.bf16.mxu0 0
    %1130 = vmatmul.mubr.bf16.gmra.mxu0 %v1096
    %v1131 = vpop.f32.mrf.mxu0
    %v1132 = vadd.f32 0.0, %v1131
    %v1133 = vpop.f32.mrf.mxu0
    %v1134 = vadd.f32 0.0, %v1133
    %v1135 = vpop.f32.mrf.mxu0
    %v1136 = vadd.f32 0.0, %v1135
    %v1137 = vpop.f32.mrf.mxu0
    %v1138 = vadd.f32 0.0, %v1137
    %1139 = vdwg.mxu0
    %1140 = vmatprep.subr.bf16.mxu0 %v644
    %1141 = vmatpush1.bf16.msra.mxu0 %v643
    %1142 = vmatprep.subr.bf16.mxu0 %v640
    %1143 = vmatpush1.bf16.msra.mxu0 %v639
    %1144 = vmatprep.subr.bf16.mxu0 %v636
    %1145 = vmatpush1.bf16.msra.mxu0 %v635
    %1146 = vmatprep.subr.bf16.mxu0 %v632
    %1147 = vmatpush1.bf16.msra.mxu0 %v631
    %1148 = vmatprep.subr.bf16.mxu0 %v628
    %1149 = vmatpush1.bf16.msra.mxu0 %v627
    %1150 = vmatprep.subr.bf16.mxu0 %v624
    %1151 = vmatpush1.bf16.msra.mxu0 %v623
    %1152 = vmatprep.subr.bf16.mxu0 %v620
    %1153 = vmatpush1.bf16.msra.mxu0 %v619
    %1154 = vmatprep.subr.bf16.mxu0 %v616
    %1155 = vmatpush1.bf16.msra.mxu0 %v615
    %1156 = vmatprep.subr.bf16.mxu0 0
    %1157 = vmatpush2.bf16.msra.mxu0 0
    %1158 = vmatprep.subr.bf16.mxu0 0
    %1159 = vmatpush2.bf16.msra.mxu0 0
    %1160 = vmatprep.subr.bf16.mxu0 0
    %1161 = vmatpush2.bf16.msra.mxu0 0
    %1162 = vmatprep.subr.bf16.mxu0 0
    %1163 = vmatpush2.bf16.msra.mxu0 0
    %1164 = vmatprep.subr.bf16.mxu0 0
    %1165 = vmatpush2.bf16.msra.mxu0 0
    %1166 = vmatprep.subr.bf16.mxu0 0
    %1167 = vmatpush2.bf16.msra.mxu0 0
    %1168 = vmatprep.subr.bf16.mxu0 0
    %1169 = vmatpush2.bf16.msra.mxu0 0
    %1170 = vmatprep.subr.bf16.mxu0 0
    %1171 = vmatpush2.bf16.msra.mxu0 0
    %1172 = vmatprep.mubr.bf16.mxu0 0
    %1173 = vmatmul.mubr.bf16.gmra.mxu0 %v1096
    %v1174 = vpop.f32.mrf.mxu0
    %v1175 = vadd.f32 0.0, %v1174
    %v1176 = vpop.f32.mrf.mxu0
    %v1177 = vadd.f32 0.0, %v1176
    %v1178 = vpop.f32.mrf.mxu0
    %v1179 = vadd.f32 0.0, %v1178
    %v1180 = vpop.f32.mrf.mxu0
    %v1181 = vadd.f32 0.0, %v1180
    %1182 = vdwg.mxu0
    %v1183 = vadd.f32 %v1088, %v1132
    %v1184 = vadd.f32 %v1089, %v1134
    %v1185 = vadd.f32 %v1090, %v1175
    %v1186 = vadd.f32 %v1091, %v1177
    %v1187 = vadd.f32 %v1092, %v1136
    %v1188 = vadd.f32 %v1093, %v1138
    %v1189 = vadd.f32 %v1094, %v1179
    %v1190 = vadd.f32 %v1095, %v1181
    %v1191 = vmul.f32 %v1183, 0.5
    %v1192 = vmul.f32 %v1187, 0.5
    %v1193 = vtanh.pop %v1191
    %v1194 = vtanh.pop %v1192
    %v1195 = vmul.f32 %v1193, 0.5
    %v1196 = vmul.f32 %v1194, 0.5
    %v1197 = vadd.f32 %v1195, 0.5
    %v1198 = vadd.f32 %v1196, 0.5
    %v1199 = vmul.f32 %v1184, 0.5
    %v1200 = vmul.f32 %v1188, 0.5
    %v1201 = vtanh.pop %v1199
    %v1202 = vtanh.pop %v1200
    %v1203 = vmul.f32 %v1201, 0.5
    %v1204 = vmul.f32 %v1202, 0.5
    %v1205 = vadd.f32 %v1203, 0.5
    %v1206 = vadd.f32 %v1204, 0.5
    %v1207 = vtanh.pop %v1185
    %v1208 = vtanh.pop %v1189
    %v1209 = vmul.f32 %v1186, 0.5
    %v1210 = vmul.f32 %v1190, 0.5
    %v1211 = vtanh.pop %v1209
    %v1212 = vtanh.pop %v1210
    %v1213 = vmul.f32 %v1211, 0.5
    %v1214 = vmul.f32 %v1212, 0.5
    %v1215 = vadd.f32 %v1213, 0.5
    %v1216 = vadd.f32 %v1214, 0.5
    %v1217 = vmul.f32 %v1205, %v1081
    %v1218 = vmul.f32 %v1206, %v1082
    %v1219 = vmul.f32 %v1197, %v1207
    %v1220 = vmul.f32 %v1198, %v1208
    %v1221 = vadd.f32 %v1217, %v1219
    %v1222 = vadd.f32 %v1218, %v1220
    %v1223 = vtanh.pop %v1221
    %v1224 = vtanh.pop %v1222
    %v1225 = vmul.f32 %v1215, %v1223
    %v1226 = vmul.f32 %v1216, %v1224
    %s1227 = scalar_lea.vmem [#allocation4], 256
    %v1228 = vld [vmem:[%s1227] sm:$0xff]
    %v1229 = vld [vmem:[%s1227 + $0x8] sm:$0xff]
    %v1230 = vld [vmem:[%s1227 + $0x10] sm:$0xff]
    %v1231 = vld [vmem:[%s1227 + $0x18] sm:$0xff]
    %v1232 = vld [vmem:[%s1227 + $0x20] sm:$0xff]
    %v1233 = vld [vmem:[%s1227 + $0x28] sm:$0xff]
    %v1234 = vld [vmem:[%s1227 + $0x30] sm:$0xff]
    %v1235 = vld [vmem:[%s1227 + $0x38] sm:$0xff]
    %v1236 = vpack.c.bf16 %v1226, %v1225
    %1237 = vmatprep.subr.bf16.mxu0 %v642
    %1238 = vmatpush1.bf16.msra.mxu0 %v641
    %1239 = vmatprep.subr.bf16.mxu0 %v638
    %1240 = vmatpush1.bf16.msra.mxu0 %v637
    %1241 = vmatprep.subr.bf16.mxu0 %v634
    %1242 = vmatpush1.bf16.msra.mxu0 %v633
    %1243 = vmatprep.subr.bf16.mxu0 %v630
    %1244 = vmatpush1.bf16.msra.mxu0 %v629
    %1245 = vmatprep.subr.bf16.mxu0 %v626
    %1246 = vmatpush1.bf16.msra.mxu0 %v625
    %1247 = vmatprep.subr.bf16.mxu0 %v622
    %1248 = vmatpush1.bf16.msra.mxu0 %v621
    %1249 = vmatprep.subr.bf16.mxu0 %v618
    %1250 = vmatpush1.bf16.msra.mxu0 %v617
    %1251 = vmatprep.subr.bf16.mxu0 %v614
    %1252 = vmatpush1.bf16.msra.mxu0 %v613
    %1253 = vmatprep.subr.bf16.mxu0 0
    %1254 = vmatpush2.bf16.msra.mxu0 0
    %1255 = vmatprep.subr.bf16.mxu0 0
    %1256 = vmatpush2.bf16.msra.mxu0 0
    %1257 = vmatprep.subr.bf16.mxu0 0
    %1258 = vmatpush2.bf16.msra.mxu0 0
    %1259 = vmatprep.subr.bf16.mxu0 0
    %1260 = vmatpush2.bf16.msra.mxu0 0
    %1261 = vmatprep.subr.bf16.mxu0 0
    %1262 = vmatpush2.bf16.msra.mxu0 0
    %1263 = vmatprep.subr.bf16.mxu0 0
    %1264 = vmatpush2.bf16.msra.mxu0 0
    %1265 = vmatprep.subr.bf16.mxu0 0
    %1266 = vmatpush2.bf16.msra.mxu0 0
    %1267 = vmatprep.subr.bf16.mxu0 0
    %1268 = vmatpush2.bf16.msra.mxu0 0
    %1269 = vmatprep.mubr.bf16.mxu0 0
    %1270 = vmatmul.mubr.bf16.gmra.mxu0 %v1236
    %v1271 = vpop.f32.mrf.mxu0
    %v1272 = vadd.f32 0.0, %v1271
    %v1273 = vpop.f32.mrf.mxu0
    %v1274 = vadd.f32 0.0, %v1273
    %v1275 = vpop.f32.mrf.mxu0
    %v1276 = vadd.f32 0.0, %v1275
    %v1277 = vpop.f32.mrf.mxu0
    %v1278 = vadd.f32 0.0, %v1277
    %1279 = vdwg.mxu0
    %1280 = vmatprep.subr.bf16.mxu0 %v644
    %1281 = vmatpush1.bf16.msra.mxu0 %v643
    %1282 = vmatprep.subr.bf16.mxu0 %v640
    %1283 = vmatpush1.bf16.msra.mxu0 %v639
    %1284 = vmatprep.subr.bf16.mxu0 %v636
    %1285 = vmatpush1.bf16.msra.mxu0 %v635
    %1286 = vmatprep.subr.bf16.mxu0 %v632
    %1287 = vmatpush1.bf16.msra.mxu0 %v631
    %1288 = vmatprep.subr.bf16.mxu0 %v628
    %1289 = vmatpush1.bf16.msra.mxu0 %v627
    %1290 = vmatprep.subr.bf16.mxu0 %v624
    %1291 = vmatpush1.bf16.msra.mxu0 %v623
    %1292 = vmatprep.subr.bf16.mxu0 %v620
    %1293 = vmatpush1.bf16.msra.mxu0 %v619
    %1294 = vmatprep.subr.bf16.mxu0 %v616
    %1295 = vmatpush1.bf16.msra.mxu0 %v615
    %1296 = vmatprep.subr.bf16.mxu0 0
    %1297 = vmatpush2.bf16.msra.mxu0 0
    %1298 = vmatprep.subr.bf16.mxu0 0
    %1299 = vmatpush2.bf16.msra.mxu0 0
    %1300 = vmatprep.subr.bf16.mxu0 0
    %1301 = vmatpush2.bf16.msra.mxu0 0
    %1302 = vmatprep.subr.bf16.mxu0 0
    %1303 = vmatpush2.bf16.msra.mxu0 0
    %1304 = vmatprep.subr.bf16.mxu0 0
    %1305 = vmatpush2.bf16.msra.mxu0 0
    %1306 = vmatprep.subr.bf16.mxu0 0
    %1307 = vmatpush2.bf16.msra.mxu0 0
    %1308 = vmatprep.subr.bf16.mxu0 0
    %1309 = vmatpush2.bf16.msra.mxu0 0
    %1310 = vmatprep.subr.bf16.mxu0 0
    %1311 = vmatpush2.bf16.msra.mxu0 0
    %1312 = vmatprep.mubr.bf16.mxu0 0
    %1313 = vmatmul.mubr.bf16.gmra.mxu0 %v1236
    %v1314 = vpop.f32.mrf.mxu0
    %v1315 = vadd.f32 0.0, %v1314
    %v1316 = vpop.f32.mrf.mxu0
    %v1317 = vadd.f32 0.0, %v1316
    %v1318 = vpop.f32.mrf.mxu0
    %v1319 = vadd.f32 0.0, %v1318
    %v1320 = vpop.f32.mrf.mxu0
    %v1321 = vadd.f32 0.0, %v1320
    %1322 = vdwg.mxu0
    %v1323 = vadd.f32 %v1228, %v1272
    %v1324 = vadd.f32 %v1229, %v1274
    %v1325 = vadd.f32 %v1230, %v1315
    %v1326 = vadd.f32 %v1231, %v1317
    %v1327 = vadd.f32 %v1232, %v1276
    %v1328 = vadd.f32 %v1233, %v1278
    %v1329 = vadd.f32 %v1234, %v1319
    %v1330 = vadd.f32 %v1235, %v1321
    %v1331 = vmul.f32 %v1323, 0.5
    %v1332 = vmul.f32 %v1327, 0.5
    %v1333 = vtanh.pop %v1331
    %v1334 = vtanh.pop %v1332
    %v1335 = vmul.f32 %v1333, 0.5
    %v1336 = vmul.f32 %v1334, 0.5
    %v1337 = vadd.f32 %v1335, 0.5
    %v1338 = vadd.f32 %v1336, 0.5
    %v1339 = vmul.f32 %v1324, 0.5
    %v1340 = vmul.f32 %v1328, 0.5
    %v1341 = vtanh.pop %v1339
    %v1342 = vtanh.pop %v1340
    %v1343 = vmul.f32 %v1341, 0.5
    %v1344 = vmul.f32 %v1342, 0.5
    %v1345 = vadd.f32 %v1343, 0.5
    %v1346 = vadd.f32 %v1344, 0.5
    %v1347 = vtanh.pop %v1325
    %v1348 = vtanh.pop %v1329
    %v1349 = vmul.f32 %v1326, 0.5
    %v1350 = vmul.f32 %v1330, 0.5
    %v1351 = vtanh.pop %v1349
    %v1352 = vtanh.pop %v1350
    %v1353 = vmul.f32 %v1351, 0.5
    %v1354 = vmul.f32 %v1352, 0.5
    %v1355 = vadd.f32 %v1353, 0.5
    %v1356 = vadd.f32 %v1354, 0.5
    %v1357 = vmul.f32 %v1345, %v1221
    %v1358 = vmul.f32 %v1346, %v1222
    %v1359 = vmul.f32 %v1337, %v1347
    %v1360 = vmul.f32 %v1338, %v1348
    %v1361 = vadd.f32 %v1357, %v1359
    %v1362 = vadd.f32 %v1358, %v1360
    %v1363 = vtanh.pop %v1361
    %v1364 = vtanh.pop %v1362
    %v1365 = vmul.f32 %v1355, %v1363
    %v1366 = vmul.f32 %v1356, %v1364
    %s1367 = scalar_lea.vmem [#allocation4], 320
    %v1368 = vld [vmem:[%s1367] sm:$0xff]
    %v1369 = vld [vmem:[%s1367 + $0x8] sm:$0xff]
    %v1370 = vld [vmem:[%s1367 + $0x10] sm:$0xff]
    %v1371 = vld [vmem:[%s1367 + $0x18] sm:$0xff]
    %v1372 = vld [vmem:[%s1367 + $0x20] sm:$0xff]
    %v1373 = vld [vmem:[%s1367 + $0x28] sm:$0xff]
    %v1374 = vld [vmem:[%s1367 + $0x30] sm:$0xff]
    %v1375 = vld [vmem:[%s1367 + $0x38] sm:$0xff]
    %v1376 = vpack.c.bf16 %v1366, %v1365
    %1377 = vmatprep.subr.bf16.mxu0 %v642
    %1378 = vmatpush1.bf16.msra.mxu0 %v641
    %1379 = vmatprep.subr.bf16.mxu0 %v638
    %1380 = vmatpush1.bf16.msra.mxu0 %v637
    %1381 = vmatprep.subr.bf16.mxu0 %v634
    %1382 = vmatpush1.bf16.msra.mxu0 %v633
    %1383 = vmatprep.subr.bf16.mxu0 %v630
    %1384 = vmatpush1.bf16.msra.mxu0 %v629
    %1385 = vmatprep.subr.bf16.mxu0 %v626
    %1386 = vmatpush1.bf16.msra.mxu0 %v625
    %1387 = vmatprep.subr.bf16.mxu0 %v622
    %1388 = vmatpush1.bf16.msra.mxu0 %v621
    %1389 = vmatprep.subr.bf16.mxu0 %v618
    %1390 = vmatpush1.bf16.msra.mxu0 %v617
    %1391 = vmatprep.subr.bf16.mxu0 %v614
    %1392 = vmatpush1.bf16.msra.mxu0 %v613
    %1393 = vmatprep.subr.bf16.mxu0 0
    %1394 = vmatpush2.bf16.msra.mxu0 0
    %1395 = vmatprep.subr.bf16.mxu0 0
    %1396 = vmatpush2.bf16.msra.mxu0 0
    %1397 = vmatprep.subr.bf16.mxu0 0
    %1398 = vmatpush2.bf16.msra.mxu0 0
    %1399 = vmatprep.subr.bf16.mxu0 0
    %1400 = vmatpush2.bf16.msra.mxu0 0
    %1401 = vmatprep.subr.bf16.mxu0 0
    %1402 = vmatpush2.bf16.msra.mxu0 0
    %1403 = vmatprep.subr.bf16.mxu0 0
    %1404 = vmatpush2.bf16.msra.mxu0 0
    %1405 = vmatprep.subr.bf16.mxu0 0
    %1406 = vmatpush2.bf16.msra.mxu0 0
    %1407 = vmatprep.subr.bf16.mxu0 0
    %1408 = vmatpush2.bf16.msra.mxu0 0
    %1409 = vmatprep.mubr.bf16.mxu0 0
    %1410 = vmatmul.mubr.bf16.gmra.mxu0 %v1376
    %v1411 = vpop.f32.mrf.mxu0
    %v1412 = vadd.f32 0.0, %v1411
    %v1413 = vpop.f32.mrf.mxu0
    %v1414 = vadd.f32 0.0, %v1413
    %v1415 = vpop.f32.mrf.mxu0
    %v1416 = vadd.f32 0.0, %v1415
    %v1417 = vpop.f32.mrf.mxu0
    %v1418 = vadd.f32 0.0, %v1417
    %1419 = vdwg.mxu0
    %1420 = vmatprep.subr.bf16.mxu0 %v644
    %1421 = vmatpush1.bf16.msra.mxu0 %v643
    %1422 = vmatprep.subr.bf16.mxu0 %v640
    %1423 = vmatpush1.bf16.msra.mxu0 %v639
    %1424 = vmatprep.subr.bf16.mxu0 %v636
    %1425 = vmatpush1.bf16.msra.mxu0 %v635
    %1426 = vmatprep.subr.bf16.mxu0 %v632
    %1427 = vmatpush1.bf16.msra.mxu0 %v631
    %1428 = vmatprep.subr.bf16.mxu0 %v628
    %1429 = vmatpush1.bf16.msra.mxu0 %v627
    %1430 = vmatprep.subr.bf16.mxu0 %v624
    %1431 = vmatpush1.bf16.msra.mxu0 %v623
    %1432 = vmatprep.subr.bf16.mxu0 %v620
    %1433 = vmatpush1.bf16.msra.mxu0 %v619
    %1434 = vmatprep.subr.bf16.mxu0 %v616
    %1435 = vmatpush1.bf16.msra.mxu0 %v615
    %1436 = vmatprep.subr.bf16.mxu0 0
    %1437 = vmatpush2.bf16.msra.mxu0 0
    %1438 = vmatprep.subr.bf16.mxu0 0
    %1439 = vmatpush2.bf16.msra.mxu0 0
    %1440 = vmatprep.subr.bf16.mxu0 0
    %1441 = vmatpush2.bf16.msra.mxu0 0
    %1442 = vmatprep.subr.bf16.mxu0 0
    %1443 = vmatpush2.bf16.msra.mxu0 0
    %1444 = vmatprep.subr.bf16.mxu0 0
    %1445 = vmatpush2.bf16.msra.mxu0 0
    %1446 = vmatprep.subr.bf16.mxu0 0
    %1447 = vmatpush2.bf16.msra.mxu0 0
    %1448 = vmatprep.subr.bf16.mxu0 0
    %1449 = vmatpush2.bf16.msra.mxu0 0
    %1450 = vmatprep.subr.bf16.mxu0 0
    %1451 = vmatpush2.bf16.msra.mxu0 0
    %1452 = vmatprep.mubr.bf16.mxu0 0
    %1453 = vmatmul.mubr.bf16.gmra.mxu0 %v1376
    %v1454 = vpop.f32.mrf.mxu0
    %v1455 = vadd.f32 0.0, %v1454
    %v1456 = vpop.f32.mrf.mxu0
    %v1457 = vadd.f32 0.0, %v1456
    %v1458 = vpop.f32.mrf.mxu0
    %v1459 = vadd.f32 0.0, %v1458
    %v1460 = vpop.f32.mrf.mxu0
    %v1461 = vadd.f32 0.0, %v1460
    %1462 = vdwg.mxu0
    %v1463 = vadd.f32 %v1368, %v1412
    %v1464 = vadd.f32 %v1369, %v1414
    %v1465 = vadd.f32 %v1370, %v1455
    %v1466 = vadd.f32 %v1371, %v1457
    %v1467 = vadd.f32 %v1372, %v1416
    %v1468 = vadd.f32 %v1373, %v1418
    %v1469 = vadd.f32 %v1374, %v1459
    %v1470 = vadd.f32 %v1375, %v1461
    %v1471 = vmul.f32 %v1463, 0.5
    %v1472 = vmul.f32 %v1467, 0.5
    %v1473 = vtanh.pop %v1471
    %v1474 = vtanh.pop %v1472
    %v1475 = vmul.f32 %v1473, 0.5
    %v1476 = vmul.f32 %v1474, 0.5
    %v1477 = vadd.f32 %v1475, 0.5
    %v1478 = vadd.f32 %v1476, 0.5
    %v1479 = vmul.f32 %v1464, 0.5
    %v1480 = vmul.f32 %v1468, 0.5
    %v1481 = vtanh.pop %v1479
    %v1482 = vtanh.pop %v1480
    %v1483 = vmul.f32 %v1481, 0.5
    %v1484 = vmul.f32 %v1482, 0.5
    %v1485 = vadd.f32 %v1483, 0.5
    %v1486 = vadd.f32 %v1484, 0.5
    %v1487 = vtanh.pop %v1465
    %v1488 = vtanh.pop %v1469
    %v1489 = vmul.f32 %v1466, 0.5
    %v1490 = vmul.f32 %v1470, 0.5
    %v1491 = vtanh.pop %v1489
    %v1492 = vtanh.pop %v1490
    %v1493 = vmul.f32 %v1491, 0.5
    %v1494 = vmul.f32 %v1492, 0.5
    %v1495 = vadd.f32 %v1493, 0.5
    %v1496 = vadd.f32 %v1494, 0.5
    %v1497 = vmul.f32 %v1485, %v1361
    %v1498 = vmul.f32 %v1486, %v1362
    %v1499 = vmul.f32 %v1477, %v1487
    %v1500 = vmul.f32 %v1478, %v1488
    %v1501 = vadd.f32 %v1497, %v1499
    %v1502 = vadd.f32 %v1498, %v1500
    %v1503 = vtanh.pop %v1501
    %v1504 = vtanh.pop %v1502
    %v1505 = vmul.f32 %v1495, %v1503
    %v1506 = vmul.f32 %v1496, %v1504
    %s1507 = scalar_lea.vmem [#allocation4], 384
    %v1508 = vld [vmem:[%s1507] sm:$0xff]
    %v1509 = vld [vmem:[%s1507 + $0x8] sm:$0xff]
    %v1510 = vld [vmem:[%s1507 + $0x10] sm:$0xff]
    %v1511 = vld [vmem:[%s1507 + $0x18] sm:$0xff]
    %v1512 = vld [vmem:[%s1507 + $0x20] sm:$0xff]
    %v1513 = vld [vmem:[%s1507 + $0x28] sm:$0xff]
    %v1514 = vld [vmem:[%s1507 + $0x30] sm:$0xff]
    %v1515 = vld [vmem:[%s1507 + $0x38] sm:$0xff]
    %v1516 = vpack.c.bf16 %v1506, %v1505
    %1517 = vmatprep.subr.bf16.mxu0 %v642
    %1518 = vmatpush1.bf16.msra.mxu0 %v641
    %1519 = vmatprep.subr.bf16.mxu0 %v638
    %1520 = vmatpush1.bf16.msra.mxu0 %v637
    %1521 = vmatprep.subr.bf16.mxu0 %v634
    %1522 = vmatpush1.bf16.msra.mxu0 %v633
    %1523 = vmatprep.subr.bf16.mxu0 %v630
    %1524 = vmatpush1.bf16.msra.mxu0 %v629
    %1525 = vmatprep.subr.bf16.mxu0 %v626
    %1526 = vmatpush1.bf16.msra.mxu0 %v625
    %1527 = vmatprep.subr.bf16.mxu0 %v622
    %1528 = vmatpush1.bf16.msra.mxu0 %v621
    %1529 = vmatprep.subr.bf16.mxu0 %v618
    %1530 = vmatpush1.bf16.msra.mxu0 %v617
    %1531 = vmatprep.subr.bf16.mxu0 %v614
    %1532 = vmatpush1.bf16.msra.mxu0 %v613
    %1533 = vmatprep.subr.bf16.mxu0 0
    %1534 = vmatpush2.bf16.msra.mxu0 0
    %1535 = vmatprep.subr.bf16.mxu0 0
    %1536 = vmatpush2.bf16.msra.mxu0 0
    %1537 = vmatprep.subr.bf16.mxu0 0
    %1538 = vmatpush2.bf16.msra.mxu0 0
    %1539 = vmatprep.subr.bf16.mxu0 0
    %1540 = vmatpush2.bf16.msra.mxu0 0
    %1541 = vmatprep.subr.bf16.mxu0 0
    %1542 = vmatpush2.bf16.msra.mxu0 0
    %1543 = vmatprep.subr.bf16.mxu0 0
    %1544 = vmatpush2.bf16.msra.mxu0 0
    %1545 = vmatprep.subr.bf16.mxu0 0
    %1546 = vmatpush2.bf16.msra.mxu0 0
    %1547 = vmatprep.subr.bf16.mxu0 0
    %1548 = vmatpush2.bf16.msra.mxu0 0
    %1549 = vmatprep.mubr.bf16.mxu0 0
    %1550 = vmatmul.mubr.bf16.gmra.mxu0 %v1516
    %v1551 = vpop.f32.mrf.mxu0
    %v1552 = vadd.f32 0.0, %v1551
    %v1553 = vpop.f32.mrf.mxu0
    %v1554 = vadd.f32 0.0, %v1553
    %v1555 = vpop.f32.mrf.mxu0
    %v1556 = vadd.f32 0.0, %v1555
    %v1557 = vpop.f32.mrf.mxu0
    %v1558 = vadd.f32 0.0, %v1557
    %1559 = vdwg.mxu0
    %1560 = vmatprep.subr.bf16.mxu0 %v644
    %1561 = vmatpush1.bf16.msra.mxu0 %v643
    %1562 = vmatprep.subr.bf16.mxu0 %v640
    %1563 = vmatpush1.bf16.msra.mxu0 %v639
    %1564 = vmatprep.subr.bf16.mxu0 %v636
    %1565 = vmatpush1.bf16.msra.mxu0 %v635
    %1566 = vmatprep.subr.bf16.mxu0 %v632
    %1567 = vmatpush1.bf16.msra.mxu0 %v631
    %1568 = vmatprep.subr.bf16.mxu0 %v628
    %1569 = vmatpush1.bf16.msra.mxu0 %v627
    %1570 = vmatprep.subr.bf16.mxu0 %v624
    %1571 = vmatpush1.bf16.msra.mxu0 %v623
    %1572 = vmatprep.subr.bf16.mxu0 %v620
    %1573 = vmatpush1.bf16.msra.mxu0 %v619
    %1574 = vmatprep.subr.bf16.mxu0 %v616
    %1575 = vmatpush1.bf16.msra.mxu0 %v615
    %1576 = vmatprep.subr.bf16.mxu0 0
    %1577 = vmatpush2.bf16.msra.mxu0 0
    %1578 = vmatprep.subr.bf16.mxu0 0
    %1579 = vmatpush2.bf16.msra.mxu0 0
    %1580 = vmatprep.subr.bf16.mxu0 0
    %1581 = vmatpush2.bf16.msra.mxu0 0
    %1582 = vmatprep.subr.bf16.mxu0 0
    %1583 = vmatpush2.bf16.msra.mxu0 0
    %1584 = vmatprep.subr.bf16.mxu0 0
    %1585 = vmatpush2.bf16.msra.mxu0 0
    %1586 = vmatprep.subr.bf16.mxu0 0
    %1587 = vmatpush2.bf16.msra.mxu0 0
    %1588 = vmatprep.subr.bf16.mxu0 0
    %1589 = vmatpush2.bf16.msra.mxu0 0
    %1590 = vmatprep.subr.bf16.mxu0 0
    %1591 = vmatpush2.bf16.msra.mxu0 0
    %1592 = vmatprep.mubr.bf16.mxu0 0
    %1593 = vmatmul.mubr.bf16.gmra.mxu0 %v1516
    %v1594 = vpop.f32.mrf.mxu0
    %v1595 = vadd.f32 0.0, %v1594
    %v1596 = vpop.f32.mrf.mxu0
    %v1597 = vadd.f32 0.0, %v1596
    %v1598 = vpop.f32.mrf.mxu0
    %v1599 = vadd.f32 0.0, %v1598
    %v1600 = vpop.f32.mrf.mxu0
    %v1601 = vadd.f32 0.0, %v1600
    %1602 = vdwg.mxu0
    %v1603 = vadd.f32 %v1508, %v1552
    %v1604 = vadd.f32 %v1509, %v1554
    %v1605 = vadd.f32 %v1510, %v1595
    %v1606 = vadd.f32 %v1511, %v1597
    %v1607 = vadd.f32 %v1512, %v1556
    %v1608 = vadd.f32 %v1513, %v1558
    %v1609 = vadd.f32 %v1514, %v1599
    %v1610 = vadd.f32 %v1515, %v1601
    %v1611 = vmul.f32 %v1603, 0.5
    %v1612 = vmul.f32 %v1607, 0.5
    %v1613 = vtanh.pop %v1611
    %v1614 = vtanh.pop %v1612
    %v1615 = vmul.f32 %v1613, 0.5
    %v1616 = vmul.f32 %v1614, 0.5
    %v1617 = vadd.f32 %v1615, 0.5
    %v1618 = vadd.f32 %v1616, 0.5
    %v1619 = vmul.f32 %v1604, 0.5
    %v1620 = vmul.f32 %v1608, 0.5
    %v1621 = vtanh.pop %v1619
    %v1622 = vtanh.pop %v1620
    %v1623 = vmul.f32 %v1621, 0.5
    %v1624 = vmul.f32 %v1622, 0.5
    %v1625 = vadd.f32 %v1623, 0.5
    %v1626 = vadd.f32 %v1624, 0.5
    %v1627 = vtanh.pop %v1605
    %v1628 = vtanh.pop %v1609
    %v1629 = vmul.f32 %v1606, 0.5
    %v1630 = vmul.f32 %v1610, 0.5
    %v1631 = vtanh.pop %v1629
    %v1632 = vtanh.pop %v1630
    %v1633 = vmul.f32 %v1631, 0.5
    %v1634 = vmul.f32 %v1632, 0.5
    %v1635 = vadd.f32 %v1633, 0.5
    %v1636 = vadd.f32 %v1634, 0.5
    %v1637 = vmul.f32 %v1625, %v1501
    %v1638 = vmul.f32 %v1626, %v1502
    %v1639 = vmul.f32 %v1617, %v1627
    %v1640 = vmul.f32 %v1618, %v1628
    %v1641 = vadd.f32 %v1637, %v1639
    %v1642 = vadd.f32 %v1638, %v1640
    %v1643 = vtanh.pop %v1641
    %v1644 = vtanh.pop %v1642
    %v1645 = vmul.f32 %v1635, %v1643
    %v1646 = vmul.f32 %v1636, %v1644
    %s1647 = scalar_lea.vmem [#allocation4], 448
    %v1648 = vld [vmem:[%s1647] sm:$0xff]
    %v1649 = vld [vmem:[%s1647 + $0x8] sm:$0xff]
    %v1650 = vld [vmem:[%s1647 + $0x10] sm:$0xff]
    %v1651 = vld [vmem:[%s1647 + $0x18] sm:$0xff]
    %v1652 = vld [vmem:[%s1647 + $0x20] sm:$0xff]
    %v1653 = vld [vmem:[%s1647 + $0x28] sm:$0xff]
    %v1654 = vld [vmem:[%s1647 + $0x30] sm:$0xff]
    %v1655 = vld [vmem:[%s1647 + $0x38] sm:$0xff]
    %v1656 = vpack.c.bf16 %v1646, %v1645
    %1657 = vmatprep.subr.bf16.mxu0 %v642
    %1658 = vmatpush1.bf16.msra.mxu0 %v641
    %1659 = vmatprep.subr.bf16.mxu0 %v638
    %1660 = vmatpush1.bf16.msra.mxu0 %v637
    %1661 = vmatprep.subr.bf16.mxu0 %v634
    %1662 = vmatpush1.bf16.msra.mxu0 %v633
    %1663 = vmatprep.subr.bf16.mxu0 %v630
    %1664 = vmatpush1.bf16.msra.mxu0 %v629
    %1665 = vmatprep.subr.bf16.mxu0 %v626
    %1666 = vmatpush1.bf16.msra.mxu0 %v625
    %1667 = vmatprep.subr.bf16.mxu0 %v622
    %1668 = vmatpush1.bf16.msra.mxu0 %v621
    %1669 = vmatprep.subr.bf16.mxu0 %v618
    %1670 = vmatpush1.bf16.msra.mxu0 %v617
    %1671 = vmatprep.subr.bf16.mxu0 %v614
    %1672 = vmatpush1.bf16.msra.mxu0 %v613
    %1673 = vmatprep.subr.bf16.mxu0 0
    %1674 = vmatpush2.bf16.msra.mxu0 0
    %1675 = vmatprep.subr.bf16.mxu0 0
    %1676 = vmatpush2.bf16.msra.mxu0 0
    %1677 = vmatprep.subr.bf16.mxu0 0
    %1678 = vmatpush2.bf16.msra.mxu0 0
    %1679 = vmatprep.subr.bf16.mxu0 0
    %1680 = vmatpush2.bf16.msra.mxu0 0
    %1681 = vmatprep.subr.bf16.mxu0 0
    %1682 = vmatpush2.bf16.msra.mxu0 0
    %1683 = vmatprep.subr.bf16.mxu0 0
    %1684 = vmatpush2.bf16.msra.mxu0 0
    %1685 = vmatprep.subr.bf16.mxu0 0
    %1686 = vmatpush2.bf16.msra.mxu0 0
    %1687 = vmatprep.subr.bf16.mxu0 0
    %1688 = vmatpush2.bf16.msra.mxu0 0
    %1689 = vmatprep.mubr.bf16.mxu0 0
    %1690 = vmatmul.mubr.bf16.gmra.mxu0 %v1656
    %v1691 = vpop.f32.mrf.mxu0
    %v1692 = vadd.f32 0.0, %v1691
    %v1693 = vpop.f32.mrf.mxu0
    %v1694 = vadd.f32 0.0, %v1693
    %v1695 = vpop.f32.mrf.mxu0
    %v1696 = vadd.f32 0.0, %v1695
    %v1697 = vpop.f32.mrf.mxu0
    %v1698 = vadd.f32 0.0, %v1697
    %1699 = vdwg.mxu0
    %1700 = vmatprep.subr.bf16.mxu0 %v644
    %1701 = vmatpush1.bf16.msra.mxu0 %v643
    %1702 = vmatprep.subr.bf16.mxu0 %v640
    %1703 = vmatpush1.bf16.msra.mxu0 %v639
    %1704 = vmatprep.subr.bf16.mxu0 %v636
    %1705 = vmatpush1.bf16.msra.mxu0 %v635
    %1706 = vmatprep.subr.bf16.mxu0 %v632
    %1707 = vmatpush1.bf16.msra.mxu0 %v631
    %1708 = vmatprep.subr.bf16.mxu0 %v628
    %1709 = vmatpush1.bf16.msra.mxu0 %v627
    %1710 = vmatprep.subr.bf16.mxu0 %v624
    %1711 = vmatpush1.bf16.msra.mxu0 %v623
    %1712 = vmatprep.subr.bf16.mxu0 %v620
    %1713 = vmatpush1.bf16.msra.mxu0 %v619
    %1714 = vmatprep.subr.bf16.mxu0 %v616
    %1715 = vmatpush1.bf16.msra.mxu0 %v615
    %1716 = vmatprep.subr.bf16.mxu0 0
    %1717 = vmatpush2.bf16.msra.mxu0 0
    %1718 = vmatprep.subr.bf16.mxu0 0
    %1719 = vmatpush2.bf16.msra.mxu0 0
    %1720 = vmatprep.subr.bf16.mxu0 0
    %1721 = vmatpush2.bf16.msra.mxu0 0
    %1722 = vmatprep.subr.bf16.mxu0 0
    %1723 = vmatpush2.bf16.msra.mxu0 0
    %1724 = vmatprep.subr.bf16.mxu0 0
    %1725 = vmatpush2.bf16.msra.mxu0 0
    %1726 = vmatprep.subr.bf16.mxu0 0
    %1727 = vmatpush2.bf16.msra.mxu0 0
    %1728 = vmatprep.subr.bf16.mxu0 0
    %1729 = vmatpush2.bf16.msra.mxu0 0
    %1730 = vmatprep.subr.bf16.mxu0 0
    %1731 = vmatpush2.bf16.msra.mxu0 0
    %1732 = vmatprep.mubr.bf16.mxu0 0
    %1733 = vmatmul.mubr.bf16.gmra.mxu0 %v1656
    %v1734 = vpop.f32.mrf.mxu0
    %v1735 = vadd.f32 0.0, %v1734
    %v1736 = vpop.f32.mrf.mxu0
    %v1737 = vadd.f32 0.0, %v1736
    %v1738 = vpop.f32.mrf.mxu0
    %v1739 = vadd.f32 0.0, %v1738
    %v1740 = vpop.f32.mrf.mxu0
    %v1741 = vadd.f32 0.0, %v1740
    %1742 = vdwg.mxu0
    %v1743 = vadd.f32 %v1648, %v1692
    %v1744 = vadd.f32 %v1649, %v1694
    %v1745 = vadd.f32 %v1650, %v1735
    %v1746 = vadd.f32 %v1651, %v1737
    %v1747 = vadd.f32 %v1652, %v1696
    %v1748 = vadd.f32 %v1653, %v1698
    %v1749 = vadd.f32 %v1654, %v1739
    %v1750 = vadd.f32 %v1655, %v1741
    %v1751 = vmul.f32 %v1743, 0.5
    %v1752 = vmul.f32 %v1747, 0.5
    %v1753 = vtanh.pop %v1751
    %v1754 = vtanh.pop %v1752
    %v1755 = vmul.f32 %v1753, 0.5
    %v1756 = vmul.f32 %v1754, 0.5
    %v1757 = vadd.f32 %v1755, 0.5
    %v1758 = vadd.f32 %v1756, 0.5
    %v1759 = vmul.f32 %v1744, 0.5
    %v1760 = vmul.f32 %v1748, 0.5
    %v1761 = vtanh.pop %v1759
    %v1762 = vtanh.pop %v1760
    %v1763 = vmul.f32 %v1761, 0.5
    %v1764 = vmul.f32 %v1762, 0.5
    %v1765 = vadd.f32 %v1763, 0.5
    %v1766 = vadd.f32 %v1764, 0.5
    %v1767 = vtanh.pop %v1745
    %v1768 = vtanh.pop %v1749
    %v1769 = vmul.f32 %v1746, 0.5
    %v1770 = vmul.f32 %v1750, 0.5
    %v1771 = vtanh.pop %v1769
    %v1772 = vtanh.pop %v1770
    %v1773 = vmul.f32 %v1771, 0.5
    %v1774 = vmul.f32 %v1772, 0.5
    %v1775 = vadd.f32 %v1773, 0.5
    %v1776 = vadd.f32 %v1774, 0.5
    %v1777 = vmul.f32 %v1765, %v1641
    %v1778 = vmul.f32 %v1766, %v1642
    %v1779 = vmul.f32 %v1757, %v1767
    %v1780 = vmul.f32 %v1758, %v1768
    %v1781 = vadd.f32 %v1777, %v1779
    %v1782 = vadd.f32 %v1778, %v1780
    %v1783 = vtanh.pop %v1781
    %v1784 = vtanh.pop %v1782
    %v1785 = vmul.f32 %v1775, %v1783
    %v1786 = vmul.f32 %v1776, %v1784
    %1787 = vst [vmem:[#allocation2] sm:$0xff] %v1785
    %1788 = vst [vmem:[#allocation2 + $0x8] sm:$0xff] %v1786
    %1789 = vst [vmem:[#allocation3] sm:$0xff] %v1781
    %1790 = vst [vmem:[#allocation3 + $0x8] sm:$0xff] %v1782
    // Predicated region
    $region34: #{tpu_custom_call.1} parent=1 // pred_check
      %p1791 = pneg %p39
    $region35: #{tpu_custom_call.1} parent=1 // pred_check_branch
      %1793 = sbr.rel (%p1791) target = $region37
    $region36: #{tpu_custom_call.1} parent=1 // pred_region
      %v1794 = vpack.c.bf16 %v1786, %v1785
      %v1795 = vld [vmem:[%s4] sm:$0xf]
      %v1796 = vld [vmem:[%s4 + $0x4] sm:$0xf]
      %v1797 = vld [vmem:[%s4 + $0x8] sm:$0xf]
      %v1798 = vld [vmem:[%s4 + $0xc] sm:$0xf]
      %v1799 = vld [vmem:[%s4 + $0x10] sm:$0xf]
      %v1800 = vld [vmem:[%s4 + $0x14] sm:$0xf]
      %v1801 = vld [vmem:[%s4 + $0x18] sm:$0xf]
      %v1802 = vld [vmem:[%s4 + $0x1c] sm:$0xf]
      %v1803 = vld [vmem:[%s4 + $0x20] sm:$0xf]
      %v1804 = vld [vmem:[%s4 + $0x24] sm:$0xf]
      %v1805 = vld [vmem:[%s4 + $0x28] sm:$0xf]
      %v1806 = vld [vmem:[%s4 + $0x2c] sm:$0xf]
      %v1807 = vld [vmem:[%s4 + $0x30] sm:$0xf]
      %v1808 = vld [vmem:[%s4 + $0x34] sm:$0xf]
      %v1809 = vld [vmem:[%s4 + $0x38] sm:$0xf]
      %v1810 = vld [vmem:[%s4 + $0x3c] sm:$0xf]
      %v1811 = vld [vmem:[%s5] sm:$0x1]
      %v1813 = vlaneseq
      %v1814 = vshrl.u32 %v1813, 7
      %v1815 = vsub.s32 0, %v1814
      %v1816 = vrot.slane %v1811, %v1815
      %v1834 = vunpack.c.l.b16 %v1795
      %v1835 = vunpack.c.l.b16 %v1796
      %v1836 = vunpack.c.l.b16 %v1797
      %v1837 = vunpack.c.l.b16 %v1798
      %v1838 = vunpack.c.l.b16 %v1799
      %v1839 = vunpack.c.l.b16 %v1800
      %v1840 = vunpack.c.l.b16 %v1801
      %v1841 = vunpack.c.l.b16 %v1802
      %v1842 = vunpack.c.l.b16 %v1803
      %v1843 = vunpack.c.l.b16 %v1804
      %v1844 = vunpack.c.l.b16 %v1805
      %v1845 = vunpack.c.l.b16 %v1806
      %v1846 = vunpack.c.l.b16 %v1807
      %v1847 = vunpack.c.l.b16 %v1808
      %v1848 = vunpack.c.l.b16 %v1809
      %v1849 = vunpack.c.l.b16 %v1810
      %v1850 = vpack.c.b16 %v1835, %v1834
      %v1851 = vpack.c.b16 %v1837, %v1836
      %v1852 = vpack.c.b16 %v1839, %v1838
      %v1853 = vpack.c.b16 %v1841, %v1840
      %v1854 = vpack.c.b16 %v1843, %v1842
      %v1855 = vpack.c.b16 %v1845, %v1844
      %v1856 = vpack.c.b16 %v1847, %v1846
      %v1857 = vpack.c.b16 %v1849, %v1848
      %1866 = vmatprep.subr.bf16.mxu0 0
      %1867 = vmatpush1.bf16.msra.mxu0 %v1857
      %1868 = vmatprep.subr.bf16.mxu0 0
      %1869 = vmatpush1.bf16.msra.mxu0 %v1856
      %1870 = vmatprep.subr.bf16.mxu0 0
      %1871 = vmatpush1.bf16.msra.mxu0 %v1855
      %1872 = vmatprep.subr.bf16.mxu0 0
      %1873 = vmatpush1.bf16.msra.mxu0 %v1854
      %1874 = vmatprep.subr.bf16.mxu0 0
      %1875 = vmatpush1.bf16.msra.mxu0 %v1853
      %1876 = vmatprep.subr.bf16.mxu0 0
      %1877 = vmatpush1.bf16.msra.mxu0 %v1852
      %1878 = vmatprep.subr.bf16.mxu0 0
      %1879 = vmatpush1.bf16.msra.mxu0 %v1851
      %1880 = vmatprep.subr.bf16.mxu0 0
      %1881 = vmatpush1.bf16.msra.mxu0 %v1850
      %1882 = vmatprep.subr.bf16.mxu0 0
      %1883 = vmatpush2.bf16.msra.mxu0 0
      %1884 = vmatprep.subr.bf16.mxu0 0
      %1885 = vmatpush2.bf16.msra.mxu0 0
      %1886 = vmatprep.subr.bf16.mxu0 0
      %1887 = vmatpush2.bf16.msra.mxu0 0
      %1888 = vmatprep.subr.bf16.mxu0 0
      %1889 = vmatpush2.bf16.msra.mxu0 0
      %1890 = vmatprep.subr.bf16.mxu0 0
      %1891 = vmatpush2.bf16.msra.mxu0 0
      %1892 = vmatprep.subr.bf16.mxu0 0
      %1893 = vmatpush2.bf16.msra.mxu0 0
      %1894 = vmatprep.subr.bf16.mxu0 0
      %1895 = vmatpush2.bf16.msra.mxu0 0
      %1896 = vmatprep.subr.bf16.mxu0 0
      %1897 = vmatpush2.bf16.msra.mxu0 0
      %1898 = vmatprep.mubr.bf16.mxu0 0
      %1899 = vmatmul.mubr.bf16.gmra.mxu0 %v1794
      %v1900 = vpop.f32.mrf.mxu0
      %v1901 = vadd.f32 %v1816, %v1900
      %v1902 = vpop.f32.mrf.mxu0
      %v1903 = vpop.f32.mrf.mxu0
      %v1904 = vadd.f32 %v1816, %v1903
      %v1905 = vpop.f32.mrf.mxu0
      %1906 = vdwg.mxu0
      %1907 = vst [vmem:[#allocation8] sm:$0xff] %v1901
      %1908 = vst [vmem:[#allocation8 + $0x8] sm:$0xff] %v1904
    $region37: #{tpu_custom_call.1} parent=1 // pred_fallthru
      _
    // Predicated region
    $region38: #{tpu_custom_call.1} parent=1 // pred_check
      _
    $region39: #{tpu_custom_call.1} parent=1 // pred_check_branch
      %1910 = sbr.rel (0) target = $region41
    $region40: #{tpu_custom_call.1} parent=1 // pred_region
      %s1912 = ssub.s32 256, 256
      %1913 = vsyncadd [#allocation7], %s1912
      %s1914 = sshll.u32 [#allocation8], 4
      %s1915 = int_to_ptr.vmem [resolvable:$true] %s1914
      %1920 = dma.vmem_to_hbm [thread:$0]  %s1915, 256, %s6, [#allocation7], 128, 128, 8
    $region41: #{tpu_custom_call.1} parent=1 // pred_fallthru
      _
    // Predicated region
    $region42: #{tpu_custom_call.1} parent=1 // pred_check
      _
    $region43: #{tpu_custom_call.1} parent=1 // pred_check_branch
      %1922 = sbr.rel (0) target = $region45
    $region44: #{tpu_custom_call.1} parent=1 // pred_region
      %1923 = dma.done [#allocation7], 256
    $region45: #{tpu_custom_call.1} parent=1 // pred_fallthru
      _
    %1924 = vsyncpa [#allocation6], 1
    %1925 = vsyncpa [#allocation7], 1

</llo_original>
